<compile_context>
chip_gen: v7x
topology: tpu7x:2x2x1
jax: 0.10.0
libtpu: 0.0.40
codegen_flags: <defaults>
</compile_context>

<pallas_src>
import functools
import jax
import jax.numpy as jnp
from jax.experimental import pallas as pl
from jax.experimental.pallas import tpu as pltpu

LANE = 128
SUBLANE = 8


def _round_up(v, m):
    return (v + m - 1) // m * m


def ffc_kernel(x_ref, w0_ref, b0_ref, w1_ref, b1_ref, w2_ref, b2_ref,
               wf_ref, bc_ref, o_ref):
    dot = functools.partial(jnp.dot, preferred_element_type=jnp.float32)
    bf16 = jnp.bfloat16

    x = x_ref[...].astype(bf16)                           # (TB, D0)

    # --- compressed block 0: mode='first', has_maxpool=True ---
    h = dot(x, w0_ref[...])                               # (TB, 4*r0) f32; slab j = pool candidate j
    r0 = b0_ref.shape[1]
    p = jnp.maximum(jnp.maximum(h[:, 0 * r0:1 * r0], h[:, 1 * r0:2 * r0]),
                    jnp.maximum(h[:, 2 * r0:3 * r0], h[:, 3 * r0:]))
    h0 = jnp.maximum(p + b0_ref[...], 0.0)                # relu (f32 VPU)

    # --- compressed block 1: mode='middle' ---
    h1 = jnp.maximum(dot(h0.astype(bf16), w1_ref[...]) + b1_ref[...], 0.0)

    # --- compressed block 2: mode='last', has_maxpool=True ---
    h = dot(h1.astype(bf16), w2_ref[...])                 # (TB, 4*r2) f32
    r2 = b2_ref.shape[1]
    p = jnp.maximum(jnp.maximum(h[:, 0 * r2:1 * r2], h[:, 1 * r2:2 * r2]),
                    jnp.maximum(h[:, 2 * r2:3 * r2], h[:, 3 * r2:]))
    h2 = jnp.maximum(p + b2_ref[...], 0.0)

    # --- V2 @ classifier folded into one matmul (exact: no nonlinearity in
    #     between); output lane-padded to 128 columns for a dense vst ---
    o_ref[...] = dot(h2.astype(bf16), wf_ref[...]) + bc_ref[...]


def prepare_params(params, mxu_dtype=jnp.bfloat16):
    """One-time weight preparation (hoisted out of the per-call hot path).

    * permutes pre-maxpool weight rows (4k+j) -> (j*r + k) so the in-kernel
      pool is a max over 4 contiguous lane slabs,
    * folds the classifier into the 'last' block's V: Wfold = Wc @ V2 (exact),
    * transposes every weight to (K, N) so all matmuls are lane-dense,
    * zero-pads the classifier output to 128 lanes,
    * casts MXU operands to bf16.
    """
    W0, b0, W1, b1, W2, b2, V2, Wc, bc = [jnp.asarray(p, jnp.float32) for p in params]
    r0, r2 = b0.shape[1], b2.shape[1]
    assert r0 % LANE == 0 and r2 % LANE == 0, (
        "pool-slab slices are only free vreg-aligned views when r0/r2 are "
        "multiples of 128; pad the compression ranks")
    D0 = W0.shape[1]
    n_classes = Wc.shape[0]
    nc_pad = _round_up(n_classes, LANE)

    W0_re = W0.reshape(r0, 4, D0).transpose(1, 0, 2).reshape(4 * r0, D0)
    W2_re = W2.reshape(r2, 4, W2.shape[1]).transpose(1, 0, 2).reshape(4 * r2, W2.shape[1])

    Wfold = Wc @ V2                                        # (n_classes, r2), f32
    Wf_pad = jnp.zeros((nc_pad, r2), jnp.float32).at[:n_classes].set(Wfold)
    bc_pad = jnp.zeros((1, nc_pad), jnp.float32).at[0, :n_classes].set(bc.reshape(-1))

    prepped = (W0_re.T.astype(mxu_dtype), b0,
               W1.T.astype(mxu_dtype), b1,
               W2_re.T.astype(mxu_dtype), b2,
               Wf_pad.T.astype(mxu_dtype), bc_pad)
    return prepped, n_classes


def feedforward_compressed(x, prepped, n_classes, *, block_b=1024):
    """x: (B, C, H, W) float32.  Returns (B, n_classes) float32 logits."""
    w0t, b0, w1t, b1, w2t, b2, wft, bcp = prepped
    B = x.shape[0]
    x_flat = x.reshape(B, -1)                              # mode=='first' flatten (free)
    D0 = x_flat.shape[1]
    nc_pad = wft.shape[1]

    # Batch tiling: TB a multiple of 8 sublanes, large to amortize the
    # ~0.35us/step grid overhead; on v7x keep >=2 grid steps so both
    # TensorCores run when the batch axis is "parallel".
    tb = min(_round_up(block_b, SUBLANE), _round_up(B, SUBLANE))
    if B >= 2 * SUBLANE:
        tb = min(tb, _round_up(pl.cdiv(B, 2), SUBLANE))
    grid_b = pl.cdiv(B, tb)                                # partial last block is OK

    const2d = lambda i: (0, 0)
    in_specs = [
        pl.BlockSpec((tb, D0), lambda i: (i, 0)),          # x: tiled over batch
        pl.BlockSpec(w0t.shape, const2d),                  # weights stay VMEM-resident
        pl.BlockSpec(b0.shape, const2d),
        pl.BlockSpec(w1t.shape, const2d),
        pl.BlockSpec(b1.shape, const2d),
        pl.BlockSpec(w2t.shape, const2d),
        pl.BlockSpec(b2.shape, const2d),
        pl.BlockSpec(wft.shape, const2d),
        pl.BlockSpec(bcp.shape, const2d),
    ]
    out_spec = pl.BlockSpec((tb, nc_pad), lambda i: (i, 0))

    out = pl.pallas_call(
        ffc_kernel,
        out_shape=jax.ShapeDtypeStruct((B, nc_pad), jnp.float32),
        grid=(grid_b,),
        in_specs=in_specs,
        out_specs=out_spec,
        compiler_params=pltpu.CompilerParams(
            dimension_semantics=("parallel",)),            # v7x: shard batch across 2 TCs
    )(x_flat, w0t, b0, w1t, b1, w2t, b2, wft, bcp)

    return out[:, :n_classes]


def reference(x, params, mxu_dtype=jnp.float32, fold_classifier=False):
    """Pure-JAX mirror of FeedforwardCompressed.forward for verification."""
    W0, b0, W1, b1, W2, b2, V2, Wc, bc = params

    def mm(a, b):
        return jnp.dot(a.astype(mxu_dtype), b.astype(mxu_dtype),
                       preferred_element_type=jnp.float32)

    B = x.shape[0]
    h = mm(x.reshape(B, -1), W0.T)
    h = h.reshape(B, -1, 4).max(-1)           # MaxPool2d(2) on reshape(B, -1, 2)
    h = jax.nn.relu(h + b0)
    h = jax.nn.relu(mm(h, W1.T) + b1)
    h = mm(h, W2.T)
    h = h.reshape(B, -1, 4).max(-1)
    h = jax.nn.relu(h + b2)
    if fold_classifier:                       # mirrors the in-kernel fold exactly
        return mm(h, (Wc @ V2).T) + bc
    h = mm(h, V2.T)                           # then reshape (B,c,h,w) -> flatten (no-op)
    return mm(h, Wc.T) + bc


if __name__ == "__main__":
    key = jax.random.PRNGKey(0)
    # B chosen so the v7x >=2-grid-step path and the partial-last-block path
    # (B not a tile multiple) are both exercised: tb=16, grid=2, last tile=4 rows.
    B, C, H, W = 20, 4, 8, 8
    D0 = C * H * W                 # 256
    r0, r1, r2 = 128, 128, 128
    last_shape = (8, 4, 4)         # self.shapes of the 'last' block
    n_feat = last_shape[0] * last_shape[1] * last_shape[2]   # 128
    n_classes = 10

    ks = jax.random.split(key, 10)
    x = jax.random.normal(ks[0], (B, C, H, W), jnp.float32)
    W0 = 0.05 * jax.random.normal(ks[1], (4 * r0, D0), jnp.float32)
    b0 = 0.05 * jax.random.normal(ks[2], (1, r0), jnp.float32)
    W1 = 0.05 * jax.random.normal(ks[3], (r1, r0), jnp.float32)
    b1 = 0.05 * jax.random.normal(ks[4], (1, r1), jnp.float32)
    W2 = 0.05 * jax.random.normal(ks[5], (4 * r2, r1), jnp.float32)
    b2 = 0.05 * jax.random.normal(ks[6], (1, r2), jnp.float32)
    V2 = 0.05 * jax.random.normal(ks[7], (n_feat, r2), jnp.float32)
    Wc = 0.05 * jax.random.normal(ks[8], (n_classes, n_feat), jnp.float32)
    bc = 0.05 * jax.random.normal(ks[9], (n_classes,), jnp.float32)

    params = (W0, b0, W1, b1, W2, b2, V2, Wc, bc)

    prepped, n_cls = prepare_params(params)                 # one-time weight prep
    out = jax.block_until_ready(feedforward_compressed(x, prepped, n_cls))
    assert out.shape == (B, n_classes)

    # tight check against a bf16-matmul, classifier-folded mirror (catches layout bugs)
    ref_bf16 = reference(x, params, mxu_dtype=jnp.bfloat16, fold_classifier=True)
    assert jnp.allclose(out, ref_bf16, rtol=1e-3, atol=1e-3), \
        float(jnp.max(jnp.abs(out - ref_bf16)))
    # looser check against the pure-f32, unfolded (torch-faithful) reference
    ref_f32 = reference(x, params, mxu_dtype=jnp.float32, fold_classifier=False)
    assert jnp.allclose(out, ref_f32, rtol=5e-2, atol=2e-2), \
        float(jnp.max(jnp.abs(out - ref_f32)))
    print("KERNEL_OK")
</pallas_src>

<mosaic_0001>
module attributes {stable_mosaic.version = 11 : i64} {
  func.func @ffc_kernel(%arg0: i32, %arg1: memref<16x256xf32, #tpu.memory_space<vmem>>, %arg2: memref<256x512xbf16, #tpu.memory_space<vmem>>, %arg3: memref<1x128xf32, #tpu.memory_space<vmem>>, %arg4: memref<128x128xbf16, #tpu.memory_space<vmem>>, %arg5: memref<1x128xf32, #tpu.memory_space<vmem>>, %arg6: memref<128x512xbf16, #tpu.memory_space<vmem>>, %arg7: memref<1x128xf32, #tpu.memory_space<vmem>>, %arg8: memref<128x128xbf16, #tpu.memory_space<vmem>>, %arg9: memref<1x128xf32, #tpu.memory_space<vmem>>, %arg10: memref<16x128xf32, #tpu.memory_space<vmem>>) attributes {dimension_semantics = [#tpu.dimension_semantics<parallel>], iteration_bounds = array<i64: 2>, scalar_prefetch = 0 : i64, scratch_operands = 0 : i64, tpu.core_type = #tpu.core_type<tc>, window_params = [{transform_indices = @transform_0, window_bounds = array<i64: 16, 256>}, {pipeline_mode = #tpu.pipeline_mode<synchronous>, transform_indices = @transform_1, window_bounds = array<i64: 256, 512>}, {pipeline_mode = #tpu.pipeline_mode<synchronous>, transform_indices = @transform_2, window_bounds = array<i64: 1, 128>}, {pipeline_mode = #tpu.pipeline_mode<synchronous>, transform_indices = @transform_3, window_bounds = array<i64: 128, 128>}, {pipeline_mode = #tpu.pipeline_mode<synchronous>, transform_indices = @transform_4, window_bounds = array<i64: 1, 128>}, {pipeline_mode = #tpu.pipeline_mode<synchronous>, transform_indices = @transform_5, window_bounds = array<i64: 128, 512>}, {pipeline_mode = #tpu.pipeline_mode<synchronous>, transform_indices = @transform_6, window_bounds = array<i64: 1, 128>}, {pipeline_mode = #tpu.pipeline_mode<synchronous>, transform_indices = @transform_7, window_bounds = array<i64: 128, 128>}, {pipeline_mode = #tpu.pipeline_mode<synchronous>, transform_indices = @transform_8, window_bounds = array<i64: 1, 128>}, {transform_indices = @transform_9, window_bounds = array<i64: 16, 128>}]} {
    %c0 = arith.constant 0 : index
    %c0_0 = arith.constant 0 : index
    %0 = vector.load %arg1[%c0, %c0_0] : memref<16x256xf32, #tpu.memory_space<vmem>>, vector<16x256xf32>
    %1 = arith.truncf %0 : vector<16x256xf32> to vector<16x256xbf16>
    %c0_1 = arith.constant 0 : index
    %c0_2 = arith.constant 0 : index
    %2 = vector.load %arg2[%c0_1, %c0_2] : memref<256x512xbf16, #tpu.memory_space<vmem>>, vector<256x512xbf16>
    %cst = arith.constant dense<0.000000e+00> : vector<16x512xf32>
    %3 = tpu.matmul %1, %2, %cst {dimension_numbers = #tpu.dot_dimension_numbers<[1], [0], [0], [1], [0, 0, 1, 1], [], []>} : vector<16x256xbf16>, vector<256x512xbf16>, vector<16x512xf32> -> vector<16x512xf32>
    %4 = vector.extract_strided_slice %3 {offsets = [0, 0], sizes = [16, 128], strides = [1, 1]} : vector<16x512xf32> to vector<16x128xf32>
    %5 = vector.extract_strided_slice %3 {offsets = [0, 128], sizes = [16, 128], strides = [1, 1]} : vector<16x512xf32> to vector<16x128xf32>
    %6 = arith.maximumf %4, %5 : vector<16x128xf32>
    %7 = vector.extract_strided_slice %3 {offsets = [0, 256], sizes = [16, 128], strides = [1, 1]} : vector<16x512xf32> to vector<16x128xf32>
    %8 = vector.extract_strided_slice %3 {offsets = [0, 384], sizes = [16, 128], strides = [1, 1]} : vector<16x512xf32> to vector<16x128xf32>
    %9 = arith.maximumf %7, %8 : vector<16x128xf32>
    %10 = arith.maximumf %6, %9 : vector<16x128xf32>
    %c0_3 = arith.constant 0 : index
    %c0_4 = arith.constant 0 : index
    %11 = vector.load %arg3[%c0_3, %c0_4] : memref<1x128xf32, #tpu.memory_space<vmem>>, vector<1x128xf32>
    %12 = vector.broadcast %11 : vector<1x128xf32> to vector<16x128xf32>
    %13 = arith.addf %10, %12 : vector<16x128xf32>
    %cst_5 = arith.constant 0.000000e+00 : f32
    %14 = vector.broadcast %cst_5 : f32 to vector<16x128xf32>
    %15 = arith.maximumf %13, %14 : vector<16x128xf32>
    %16 = arith.truncf %15 : vector<16x128xf32> to vector<16x128xbf16>
    %c0_6 = arith.constant 0 : index
    %c0_7 = arith.constant 0 : index
    %17 = vector.load %arg4[%c0_6, %c0_7] : memref<128x128xbf16, #tpu.memory_space<vmem>>, vector<128x128xbf16>
    %cst_8 = arith.constant dense<0.000000e+00> : vector<16x128xf32>
    %18 = tpu.matmul %16, %17, %cst_8 {dimension_numbers = #tpu.dot_dimension_numbers<[1], [0], [0], [1], [0, 0, 1, 1], [], []>} : vector<16x128xbf16>, vector<128x128xbf16>, vector<16x128xf32> -> vector<16x128xf32>
    %c0_9 = arith.constant 0 : index
    %c0_10 = arith.constant 0 : index
    %19 = vector.load %arg5[%c0_9, %c0_10] : memref<1x128xf32, #tpu.memory_space<vmem>>, vector<1x128xf32>
    %20 = vector.broadcast %19 : vector<1x128xf32> to vector<16x128xf32>
    %21 = arith.addf %18, %20 : vector<16x128xf32>
    %cst_11 = arith.constant 0.000000e+00 : f32
    %22 = vector.broadcast %cst_11 : f32 to vector<16x128xf32>
    %23 = arith.maximumf %21, %22 : vector<16x128xf32>
    %24 = arith.truncf %23 : vector<16x128xf32> to vector<16x128xbf16>
    %c0_12 = arith.constant 0 : index
    %c0_13 = arith.constant 0 : index
    %25 = vector.load %arg6[%c0_12, %c0_13] : memref<128x512xbf16, #tpu.memory_space<vmem>>, vector<128x512xbf16>
    %cst_14 = arith.constant dense<0.000000e+00> : vector<16x512xf32>
    %26 = tpu.matmul %24, %25, %cst_14 {dimension_numbers = #tpu.dot_dimension_numbers<[1], [0], [0], [1], [0, 0, 1, 1], [], []>} : vector<16x128xbf16>, vector<128x512xbf16>, vector<16x512xf32> -> vector<16x512xf32>
    %27 = vector.extract_strided_slice %26 {offsets = [0, 0], sizes = [16, 128], strides = [1, 1]} : vector<16x512xf32> to vector<16x128xf32>
    %28 = vector.extract_strided_slice %26 {offsets = [0, 128], sizes = [16, 128], strides = [1, 1]} : vector<16x512xf32> to vector<16x128xf32>
    %29 = arith.maximumf %27, %28 : vector<16x128xf32>
    %30 = vector.extract_strided_slice %26 {offsets = [0, 256], sizes = [16, 128], strides = [1, 1]} : vector<16x512xf32> to vector<16x128xf32>
    %31 = vector.extract_strided_slice %26 {offsets = [0, 384], sizes = [16, 128], strides = [1, 1]} : vector<16x512xf32> to vector<16x128xf32>
    %32 = arith.maximumf %30, %31 : vector<16x128xf32>
    %33 = arith.maximumf %29, %32 : vector<16x128xf32>
    %c0_15 = arith.constant 0 : index
    %c0_16 = arith.constant 0 : index
    %34 = vector.load %arg7[%c0_15, %c0_16] : memref<1x128xf32, #tpu.memory_space<vmem>>, vector<1x128xf32>
    %35 = vector.broadcast %34 : vector<1x128xf32> to vector<16x128xf32>
    %36 = arith.addf %33, %35 : vector<16x128xf32>
    %cst_17 = arith.constant 0.000000e+00 : f32
    %37 = vector.broadcast %cst_17 : f32 to vector<16x128xf32>
    %38 = arith.maximumf %36, %37 : vector<16x128xf32>
    %39 = arith.truncf %38 : vector<16x128xf32> to vector<16x128xbf16>
    %c0_18 = arith.constant 0 : index
    %c0_19 = arith.constant 0 : index
    %40 = vector.load %arg8[%c0_18, %c0_19] : memref<128x128xbf16, #tpu.memory_space<vmem>>, vector<128x128xbf16>
    %cst_20 = arith.constant dense<0.000000e+00> : vector<16x128xf32>
    %41 = tpu.matmul %39, %40, %cst_20 {dimension_numbers = #tpu.dot_dimension_numbers<[1], [0], [0], [1], [0, 0, 1, 1], [], []>} : vector<16x128xbf16>, vector<128x128xbf16>, vector<16x128xf32> -> vector<16x128xf32>
    %c0_21 = arith.constant 0 : index
    %c0_22 = arith.constant 0 : index
    %42 = vector.load %arg9[%c0_21, %c0_22] : memref<1x128xf32, #tpu.memory_space<vmem>>, vector<1x128xf32>
    %43 = vector.broadcast %42 : vector<1x128xf32> to vector<16x128xf32>
    %44 = arith.addf %41, %43 : vector<16x128xf32>
    %c0_23 = arith.constant 0 : index
    %c0_24 = arith.constant 0 : index
    %45 = vector.load %arg10[%c0_23, %c0_24] : memref<16x128xf32, #tpu.memory_space<vmem>>, vector<16x128xf32>
    tpu.vector_store %arg10[%c0_23, %c0_24], %44 {strides = array<i32>} : memref<16x128xf32, #tpu.memory_space<vmem>>, vector<16x128xf32>,
    return
  }
  func.func @transform_0(%arg0: i32) -> (i32, i32) {
    %c0_i32 = arith.constant 0 : i32
    %c0_i32_0 = arith.constant 0 : i32
    return %arg0, %c0_i32 : i32, i32
  }
  func.func @transform_1(%arg0: i32) -> (i32, i32) {
    %c0_i32 = arith.constant 0 : i32
    %c0_i32_0 = arith.constant 0 : i32
    %c0_i32_1 = arith.constant 0 : i32
    return %c0_i32, %c0_i32_0 : i32, i32
  }
  func.func @transform_2(%arg0: i32) -> (i32, i32) {
    %c0_i32 = arith.constant 0 : i32
    %c0_i32_0 = arith.constant 0 : i32
    %c0_i32_1 = arith.constant 0 : i32
    return %c0_i32, %c0_i32_0 : i32, i32
  }
  func.func @transform_3(%arg0: i32) -> (i32, i32) {
    %c0_i32 = arith.constant 0 : i32
    %c0_i32_0 = arith.constant 0 : i32
    %c0_i32_1 = arith.constant 0 : i32
    return %c0_i32, %c0_i32_0 : i32, i32
  }
  func.func @transform_4(%arg0: i32) -> (i32, i32) {
    %c0_i32 = arith.constant 0 : i32
    %c0_i32_0 = arith.constant 0 : i32
    %c0_i32_1 = arith.constant 0 : i32
    return %c0_i32, %c0_i32_0 : i32, i32
  }
  func.func @transform_5(%arg0: i32) -> (i32, i32) {
    %c0_i32 = arith.constant 0 : i32
    %c0_i32_0 = arith.constant 0 : i32
    %c0_i32_1 = arith.constant 0 : i32
    return %c0_i32, %c0_i32_0 : i32, i32
  }
  func.func @transform_6(%arg0: i32) -> (i32, i32) {
    %c0_i32 = arith.constant 0 : i32
    %c0_i32_0 = arith.constant 0 : i32
    %c0_i32_1 = arith.constant 0 : i32
    return %c0_i32, %c0_i32_0 : i32, i32
  }
  func.func @transform_7(%arg0: i32) -> (i32, i32) {
    %c0_i32 = arith.constant 0 : i32
    %c0_i32_0 = arith.constant 0 : i32
    %c0_i32_1 = arith.constant 0 : i32
    return %c0_i32, %c0_i32_0 : i32, i32
  }
  func.func @transform_8(%arg0: i32) -> (i32, i32) {
    %c0_i32 = arith.constant 0 : i32
    %c0_i32_0 = arith.constant 0 : i32
    %c0_i32_1 = arith.constant 0 : i32
    return %c0_i32, %c0_i32_0 : i32, i32
  }
  func.func @transform_9(%arg0: i32) -> (i32, i32) {
    %c0_i32 = arith.constant 0 : i32
    %c0_i32_0 = arith.constant 0 : i32
    return %arg0, %c0_i32 : i32, i32
  }
}

</mosaic_0001>

<llo_original>
// kernel: tpu_custom_call.1
$region0: #{tpu_custom_call.1}
  #allocation0 [shape = 'u32[]', space=smem, size = 0x4, offset = 0x4, fixed_abs, tag = 'smem constant byte address 0x4 - core index']
  #allocation1 [shape = 'u32[144,128]{1,0:T(1,128)}', space=vmem, size = 0x12000, scoped, tag = 'internal scratch']
  %s0 = inlined_call_operand.hbm [shape: f32[20,256], index: 0, kind: input, shape index: {}]
  %s1 = inlined_call_operand.hbm [shape: bf16[256,512], index: 1, kind: input, shape index: {}]
  %s2 = inlined_call_operand.vmem [shape: f32[1,128], index: 2, kind: input, shape index: {}]
  %s3 = inlined_call_operand.hbm [shape: bf16[128,128], index: 3, kind: input, shape index: {}]
  %s4 = inlined_call_operand.vmem [shape: f32[1,128], index: 4, kind: input, shape index: {}]
  %s5 = inlined_call_operand.hbm [shape: bf16[128,512], index: 5, kind: input, shape index: {}]
  %s6 = inlined_call_operand.vmem [shape: f32[1,128], index: 6, kind: input, shape index: {}]
  %s7 = inlined_call_operand.hbm [shape: bf16[128,128], index: 7, kind: input, shape index: {}]
  %s8 = inlined_call_operand.vmem [shape: f32[1,128], index: 8, kind: input, shape index: {}]
  %s9 = inlined_call_operand.hbm [shape: f32[20,128], index: 9, kind: output, shape index: {}]
  %s10 = sld [smem:[#allocation0]]
  $region89: #{tpu_custom_call.1} parent=0
    _
  %s12 = ssub.s32 1, %s10
  %s13 = scalar_select 0, %s12, %s10
  $region1: #{tpu_custom_call.1} parent=0
    #allocation2 [shape = 'u8[32768]{0}', space=vmem, size = 0x8000, scoped, tag = 'input window, operand 0']
    #allocation3 [shape = 's32[2]{0}', space=sflag, size = 0x8, scoped, tag = 'scoped memory for tpu_custom_call.1']
    #allocation4 [shape = 's32[2]{0}', space=sflag, size = 0x8, scoped, tag = 'scoped memory for tpu_custom_call.1']
    #allocation5 [shape = 'u8[262144]{0}', space=vmem, size = 0x40000, scoped, tag = 'input window, operand 1, single buffered']
    #allocation6 [shape = 's32[1]{0}', space=sflag, size = 0x4, scoped, tag = 'scoped memory for tpu_custom_call.1']
    #allocation7 [shape = 'u8[32768]{0}', space=vmem, size = 0x8000, scoped, tag = 'input window, operand 3, single buffered']
    #allocation8 [shape = 'u8[131072]{0}', space=vmem, size = 0x20000, scoped, tag = 'input window, operand 5, single buffered']
    #allocation9 [shape = 's32[1]{0}', space=sflag, size = 0x4, scoped, tag = 'scoped memory for tpu_custom_call.1']
    #allocation10 [shape = 'u8[32768]{0}', space=vmem, size = 0x8000, scoped, tag = 'input window, operand 7, single buffered']
    #allocation11 [shape = 'u8[16384]{0}', space=vmem, size = 0x4000, scoped, tag = 'output window, operand 0']
    %14 = vsyncpa [#allocation3], 0
    %s15 = scalar_lea.sflag [#allocation3], 1
    %16 = vsyncpa %s15, 0
    %17 = vsyncpa [#allocation6], 0
    %18 = vsyncpa [#allocation9], 0
    %19 = vsyncpa [#allocation4], 0
    %s20 = scalar_lea.sflag [#allocation4], 1
    %21 = vsyncpa %s20, 0
    loop: start=0, step=1, limit=4
    $region2: #{tpu_custom_call.1} parent=1 // loop_pre_header
      _
    $region3: #{tpu_custom_call.1} parent=1 // loop_header
      %s23 = sphi 0, %s27
      %p24 = scmp.ge.s32.totalorder %s23, 4
      %s33 = sphi 0, %s35
      %s36 = sphi 0, %s33
      %s37 = sphi 0, %s36
      %s53 = sphi 0, %s37
      %s57 = sphi 0, %s57
      %s59 = sphi 0, %s57
      %s60 = sphi 0, %s59
      %s74 = sphi 0, %s60
      %s78 = sphi 0, %s78
      %s80 = sphi 0, %s78
      %s81 = sphi 0, %s80
      %s95 = sphi 0, %s81
      %s99 = sphi 0, %s99
      %s101 = sphi 0, %s99
      %s102 = sphi 0, %s101
      %s116 = sphi 0, %s102
      %s120 = sphi 0, %s120
      %s122 = sphi 0, %s120
      %s123 = sphi 0, %s122
      %s137 = sphi 0, %s123
      %s141 = sphi 0, %s141
      %s143 = sphi 0, %s141
      %s144 = sphi 0, %s143
      %s158 = sphi 0, %s144
      %s162 = sphi 0, %s162
      %s164 = sphi 0, %s162
      %s165 = sphi 0, %s164
      %s179 = sphi 0, %s165
      %s183 = sphi 0, %s183
      %s185 = sphi 0, %s183
      %s186 = sphi 0, %s185
      %s200 = sphi 0, %s186
      %s204 = sphi 0, %s204
      %s206 = sphi 0, %s204
      %s207 = sphi 0, %s206
      %s221 = sphi 0, %s207
      %s227 = sphi 0, %s229
      %s230 = sphi 0, %s227
      %s231 = sphi 0, %s230
      %s247 = sphi 0, %s231
    $region4: #{tpu_custom_call.1} parent=1 // loop_header_branch
      %26 = sbr.rel (%p24) target = $region8
    $region5: #{tpu_custom_call.1} parent=1 // loop_body
      %s28 = ssub.s32 %s23, 1
      %s29 = ssub.s32 %s23, 2
      %s30 = sadd.s32 %s23, 1
      %s31 = ssub.s32 %s23, %s30
      %p32 = scmp.eq.s32.totalorder %s31, 0
      %s34 = sadd.s32 %s33, 1
      %s35 = scalar_select %p32, %s33, %s34
      %p38 = pneg %p32
      %p39 = scmp.eq.s32.totalorder %s23, 1
      %p40 = por %p38, %p39
      %p41 = scmp.ne.s32.totalorder %s33, %s36
      %p42 = scmp.eq.s32.totalorder %s23, 0
      %p43 = por %p41, %p42
      %p44 = scmp.ne.s32.totalorder %s33, %s36
      %p45 = scmp.eq.s32.totalorder %s28, 1
      %p46 = por %p44, %p45
      %p47 = scmp.ne.s32.totalorder %s36, %s37
      %p48 = scmp.eq.s32.totalorder %s28, 0
      %p49 = por %p47, %p48
      %p50 = scmp.ne.s32.totalorder %s36, %s37
      %p51 = scmp.eq.s32.totalorder %s29, 1
      %p52 = por %p50, %p51
      %p54 = scmp.ne.s32.totalorder %s37, %s53
      %p55 = scmp.eq.s32.totalorder %s29, 0
      %p56 = por %p54, %p55
      %s58 = sadd.s32 %s57, 1
      %p61 = scmp.eq.s32.totalorder %s23, 1
      %p62 = scmp.ne.s32.totalorder %s57, %s59
      %p63 = scmp.eq.s32.totalorder %s23, 0
      %p64 = por %p62, %p63
      %p65 = scmp.ne.s32.totalorder %s57, %s59
      %p66 = scmp.eq.s32.totalorder %s28, 1
      %p67 = por %p65, %p66
      %p68 = scmp.ne.s32.totalorder %s59, %s60
      %p69 = scmp.eq.s32.totalorder %s28, 0
      %p70 = por %p68, %p69
      %p71 = scmp.ne.s32.totalorder %s59, %s60
      %p72 = scmp.eq.s32.totalorder %s29, 1
      %p73 = por %p71, %p72
      %p75 = scmp.ne.s32.totalorder %s60, %s74
      %p76 = scmp.eq.s32.totalorder %s29, 0
      %p77 = por %p75, %p76
      %s79 = sadd.s32 %s78, 1
      %p82 = scmp.eq.s32.totalorder %s23, 1
      %p83 = scmp.ne.s32.totalorder %s78, %s80
      %p84 = scmp.eq.s32.totalorder %s23, 0
      %p85 = por %p83, %p84
      %p86 = scmp.ne.s32.totalorder %s78, %s80
      %p87 = scmp.eq.s32.totalorder %s28, 1
      %p88 = por %p86, %p87
      %p89 = scmp.ne.s32.totalorder %s80, %s81
      %p90 = scmp.eq.s32.totalorder %s28, 0
      %p91 = por %p89, %p90
      %p92 = scmp.ne.s32.totalorder %s80, %s81
      %p93 = scmp.eq.s32.totalorder %s29, 1
      %p94 = por %p92, %p93
      %p96 = scmp.ne.s32.totalorder %s81, %s95
      %p97 = scmp.eq.s32.totalorder %s29, 0
      %p98 = por %p96, %p97
      %s100 = sadd.s32 %s99, 1
      %p103 = scmp.eq.s32.totalorder %s23, 1
      %p104 = scmp.ne.s32.totalorder %s99, %s101
      %p105 = scmp.eq.s32.totalorder %s23, 0
      %p106 = por %p104, %p105
      %p107 = scmp.ne.s32.totalorder %s99, %s101
      %p108 = scmp.eq.s32.totalorder %s28, 1
      %p109 = por %p107, %p108
      %p110 = scmp.ne.s32.totalorder %s101, %s102
      %p111 = scmp.eq.s32.totalorder %s28, 0
      %p112 = por %p110, %p111
      %p113 = scmp.ne.s32.totalorder %s101, %s102
      %p114 = scmp.eq.s32.totalorder %s29, 1
      %p115 = por %p113, %p114
      %p117 = scmp.ne.s32.totalorder %s102, %s116
      %p118 = scmp.eq.s32.totalorder %s29, 0
      %p119 = por %p117, %p118
      %s121 = sadd.s32 %s120, 1
      %p124 = scmp.eq.s32.totalorder %s23, 1
      %p125 = scmp.ne.s32.totalorder %s120, %s122
      %p126 = scmp.eq.s32.totalorder %s23, 0
      %p127 = por %p125, %p126
      %p128 = scmp.ne.s32.totalorder %s120, %s122
      %p129 = scmp.eq.s32.totalorder %s28, 1
      %p130 = por %p128, %p129
      %p131 = scmp.ne.s32.totalorder %s122, %s123
      %p132 = scmp.eq.s32.totalorder %s28, 0
      %p133 = por %p131, %p132
      %p134 = scmp.ne.s32.totalorder %s122, %s123
      %p135 = scmp.eq.s32.totalorder %s29, 1
      %p136 = por %p134, %p135
      %p138 = scmp.ne.s32.totalorder %s123, %s137
      %p139 = scmp.eq.s32.totalorder %s29, 0
      %p140 = por %p138, %p139
      %s142 = sadd.s32 %s141, 1
      %p145 = scmp.eq.s32.totalorder %s23, 1
      %p146 = scmp.ne.s32.totalorder %s141, %s143
      %p147 = scmp.eq.s32.totalorder %s23, 0
      %p148 = por %p146, %p147
      %p149 = scmp.ne.s32.totalorder %s141, %s143
      %p150 = scmp.eq.s32.totalorder %s28, 1
      %p151 = por %p149, %p150
      %p152 = scmp.ne.s32.totalorder %s143, %s144
      %p153 = scmp.eq.s32.totalorder %s28, 0
      %p154 = por %p152, %p153
      %p155 = scmp.ne.s32.totalorder %s143, %s144
      %p156 = scmp.eq.s32.totalorder %s29, 1
      %p157 = por %p155, %p156
      %p159 = scmp.ne.s32.totalorder %s144, %s158
      %p160 = scmp.eq.s32.totalorder %s29, 0
      %p161 = por %p159, %p160
      %s163 = sadd.s32 %s162, 1
      %p166 = scmp.eq.s32.totalorder %s23, 1
      %p167 = scmp.ne.s32.totalorder %s162, %s164
      %p168 = scmp.eq.s32.totalorder %s23, 0
      %p169 = por %p167, %p168
      %p170 = scmp.ne.s32.totalorder %s162, %s164
      %p171 = scmp.eq.s32.totalorder %s28, 1
      %p172 = por %p170, %p171
      %p173 = scmp.ne.s32.totalorder %s164, %s165
      %p174 = scmp.eq.s32.totalorder %s28, 0
      %p175 = por %p173, %p174
      %p176 = scmp.ne.s32.totalorder %s164, %s165
      %p177 = scmp.eq.s32.totalorder %s29, 1
      %p178 = por %p176, %p177
      %p180 = scmp.ne.s32.totalorder %s165, %s179
      %p181 = scmp.eq.s32.totalorder %s29, 0
      %p182 = por %p180, %p181
      %s184 = sadd.s32 %s183, 1
      %p187 = scmp.eq.s32.totalorder %s23, 1
      %p188 = scmp.ne.s32.totalorder %s183, %s185
      %p189 = scmp.eq.s32.totalorder %s23, 0
      %p190 = por %p188, %p189
      %p191 = scmp.ne.s32.totalorder %s183, %s185
      %p192 = scmp.eq.s32.totalorder %s28, 1
      %p193 = por %p191, %p192
      %p194 = scmp.ne.s32.totalorder %s185, %s186
      %p195 = scmp.eq.s32.totalorder %s28, 0
      %p196 = por %p194, %p195
      %p197 = scmp.ne.s32.totalorder %s185, %s186
      %p198 = scmp.eq.s32.totalorder %s29, 1
      %p199 = por %p197, %p198
      %p201 = scmp.ne.s32.totalorder %s186, %s200
      %p202 = scmp.eq.s32.totalorder %s29, 0
      %p203 = por %p201, %p202
      %s205 = sadd.s32 %s204, 1
      %p208 = scmp.eq.s32.totalorder %s23, 1
      %p209 = scmp.ne.s32.totalorder %s204, %s206
      %p210 = scmp.eq.s32.totalorder %s23, 0
      %p211 = por %p209, %p210
      %p212 = scmp.ne.s32.totalorder %s204, %s206
      %p213 = scmp.eq.s32.totalorder %s28, 1
      %p214 = por %p212, %p213
      %p215 = scmp.ne.s32.totalorder %s206, %s207
      %p216 = scmp.eq.s32.totalorder %s28, 0
      %p217 = por %p215, %p216
      %p218 = scmp.ne.s32.totalorder %s206, %s207
      %p219 = scmp.eq.s32.totalorder %s29, 1
      %p220 = por %p218, %p219
      %p222 = scmp.ne.s32.totalorder %s207, %s221
      %p223 = scmp.eq.s32.totalorder %s29, 0
      %p224 = por %p222, %p223
      %s225 = ssub.s32 %s23, %s30
      %p226 = scmp.eq.s32.totalorder %s225, 0
      %s228 = sadd.s32 %s227, 1
      %s229 = scalar_select %p226, %s227, %s228
      %p232 = pneg %p226
      %p233 = scmp.eq.s32.totalorder %s23, 1
      %p234 = por %p232, %p233
      %p235 = scmp.ne.s32.totalorder %s227, %s230
      %p236 = scmp.eq.s32.totalorder %s23, 0
      %p237 = por %p235, %p236
      %p238 = scmp.ne.s32.totalorder %s227, %s230
      %p239 = scmp.eq.s32.totalorder %s28, 1
      %p240 = por %p238, %p239
      %p241 = scmp.ne.s32.totalorder %s230, %s231
      %p242 = scmp.eq.s32.totalorder %s28, 0
      %p243 = por %p241, %p242
      %p244 = scmp.ne.s32.totalorder %s230, %s231
      %p245 = scmp.eq.s32.totalorder %s29, 1
      %p246 = por %p244, %p245
      %p248 = scmp.ne.s32.totalorder %s231, %s247
      %p249 = scmp.eq.s32.totalorder %s29, 0
      %p250 = por %p248, %p249
      %p251 = scmp.le.s32.totalorder 1, %s23
      %p252 = scmp.lt.s32.totalorder %s23, 3
      %p253 = pnand %p251, %p252
      %p254 = pneg %p253
      // Predicated region
      $region9: #{tpu_custom_call.1} parent=5 // pred_check
        _
      $region10: #{tpu_custom_call.1} parent=5 // pred_check_branch
        %256 = sbr.rel (%p253) target = $region12
      $region11: #{tpu_custom_call.1} parent=5 // pred_region
        %s257 = ssub.s32 %s23, 1
        // Predicated region
        $region13: #{tpu_custom_call.1} parent=11 // pred_check
          %p258 = pneg %p70
        $region14: #{tpu_custom_call.1} parent=11 // pred_check_branch
          %260 = sbr.rel (%p258) target = $region16
        $region15: #{tpu_custom_call.1} parent=11 // pred_region
          %s262 = ssub.s32 8192, 8192
          %263 = vsyncadd [#allocation6], %s262
          %s264 = sshll.u32 [#allocation5], 4
          %s265 = int_to_ptr.vmem [resolvable:$true] %s264
          %270 = dma.hbm_to_vmem [thread:$0]  %s1, 8192, %s265, [#allocation6], 256, 256, 16
        $region16: #{tpu_custom_call.1} parent=11 // pred_fallthru
          _
        // Predicated region
        $region17: #{tpu_custom_call.1} parent=11 // pred_check
          %p271 = pneg %p91
        $region18: #{tpu_custom_call.1} parent=11 // pred_check_branch
          %273 = sbr.rel (%p271) target = $region20
        $region19: #{tpu_custom_call.1} parent=11 // pred_region
          _
        $region20: #{tpu_custom_call.1} parent=11 // pred_fallthru
          _
        // Predicated region
        $region21: #{tpu_custom_call.1} parent=11 // pred_check
          %p274 = pneg %p112
        $region22: #{tpu_custom_call.1} parent=11 // pred_check_branch
          %276 = sbr.rel (%p274) target = $region24
        $region23: #{tpu_custom_call.1} parent=11 // pred_region
          %s278 = ssub.s32 1024, 1024
          %279 = vsyncadd [#allocation6], %s278
          %s280 = sshll.u32 [#allocation7], 4
          %s281 = int_to_ptr.vmem [resolvable:$true] %s280
          %286 = dma.hbm_to_vmem [thread:$0]  %s3, 1024, %s281, [#allocation6], 64, 64, 4
        $region24: #{tpu_custom_call.1} parent=11 // pred_fallthru
          _
        // Predicated region
        $region25: #{tpu_custom_call.1} parent=11 // pred_check
          %p287 = pneg %p133
        $region26: #{tpu_custom_call.1} parent=11 // pred_check_branch
          %289 = sbr.rel (%p287) target = $region28
        $region27: #{tpu_custom_call.1} parent=11 // pred_region
          _
        $region28: #{tpu_custom_call.1} parent=11 // pred_fallthru
          _
        // Predicated region
        $region29: #{tpu_custom_call.1} parent=11 // pred_check
          %p290 = pneg %p154
        $region30: #{tpu_custom_call.1} parent=11 // pred_check_branch
          %292 = sbr.rel (%p290) target = $region32
        $region31: #{tpu_custom_call.1} parent=11 // pred_region
          %s294 = ssub.s32 4096, 4096
          %295 = vsyncadd [#allocation9], %s294
          %s296 = sshll.u32 [#allocation8], 4
          %s297 = int_to_ptr.vmem [resolvable:$true] %s296
          %302 = dma.hbm_to_vmem [thread:$0]  %s5, 4096, %s297, [#allocation9], 256, 256, 16
        $region32: #{tpu_custom_call.1} parent=11 // pred_fallthru
          _
        // Predicated region
        $region33: #{tpu_custom_call.1} parent=11 // pred_check
          %p303 = pneg %p175
        $region34: #{tpu_custom_call.1} parent=11 // pred_check_branch
          %305 = sbr.rel (%p303) target = $region36
        $region35: #{tpu_custom_call.1} parent=11 // pred_region
          _
        $region36: #{tpu_custom_call.1} parent=11 // pred_fallthru
          _
        // Predicated region
        $region37: #{tpu_custom_call.1} parent=11 // pred_check
          %p306 = pneg %p196
        $region38: #{tpu_custom_call.1} parent=11 // pred_check_branch
          %308 = sbr.rel (%p306) target = $region40
        $region39: #{tpu_custom_call.1} parent=11 // pred_region
          %s310 = ssub.s32 1024, 1024
          %311 = vsyncadd [#allocation9], %s310
          %s312 = sshll.u32 [#allocation10], 4
          %s313 = int_to_ptr.vmem [resolvable:$true] %s312
          %318 = dma.hbm_to_vmem [thread:$0]  %s7, 1024, %s313, [#allocation9], 64, 64, 4
        $region40: #{tpu_custom_call.1} parent=11 // pred_fallthru
          _
        // Predicated region
        $region41: #{tpu_custom_call.1} parent=11 // pred_check
          %p319 = pneg %p217
        $region42: #{tpu_custom_call.1} parent=11 // pred_check_branch
          %321 = sbr.rel (%p319) target = $region44
        $region43: #{tpu_custom_call.1} parent=11 // pred_region
          _
        $region44: #{tpu_custom_call.1} parent=11 // pred_fallthru
          _
      $region12: #{tpu_custom_call.1} parent=5 // pred_fallthru
        _
      %p322 = scmp.lt.s32.totalorder %s23, 2
      // Predicated region
      $region45: #{tpu_custom_call.1} parent=5 // pred_check
        %p323 = pneg %p322
      $region46: #{tpu_custom_call.1} parent=5 // pred_check_branch
        %325 = sbr.rel (%p323) target = $region48
      $region47: #{tpu_custom_call.1} parent=5 // pred_region
        // Predicated region
        $region49: #{tpu_custom_call.1} parent=47 // pred_check
          %p326 = pneg %p43
        $region50: #{tpu_custom_call.1} parent=47 // pred_check_branch
          %328 = sbr.rel (%p326) target = $region52
        $region51: #{tpu_custom_call.1} parent=47 // pred_region
          %s329 = sand.u32 %s33, 1
          %s330 = scalar_lea.sflag [#allocation3], %s329
          %s331 = sand.u32 %s33, 1
          %s332 = smul.addr %s331, 32
          %s333 = scalar_lea.vmem [#allocation2], %s332
          %s334 = smul.u32 2, %s23
          %s335 = ssub.s32 3, %s334
          %p336 = scmp.lt.s32.totalorder %s335, 2
          %s337 = scalar_select %p336, %s335, 2
          %s338 = smul.u32 128, %s337
          %s339 = smul.u32 %s338, 2
          %s341 = ssub.s32 512, %s339
          %342 = vsyncadd %s330, %s341
          %p343 = scmp.ne.s32.totalorder 0, %s339
          %s344 = smul.addr %s334, 2
          %s345 = smul.addr %s344, 128
          %s346 = scalar_lea.hbm %s0, %s345
          %s347 = smul.u32 16, %s337
          %s348 = sshll.u32 %s333, 4
          %s349 = int_to_ptr.vmem [resolvable:$true] %s348
          %s350 = sshll.u32 %s347, 4
          %354 = dma.hbm_to_vmem [thread:$0]  (%p343), %s346, %s350, %s349, %s330, 256, 256, 16
        $region52: #{tpu_custom_call.1} parent=47 // pred_fallthru
          _
      $region48: #{tpu_custom_call.1} parent=5 // pred_fallthru
        _
      %p355 = scmp.le.s32.totalorder 1, %s23
      %p356 = scmp.lt.s32.totalorder %s23, 3
      %p357 = pnand %p355, %p356
      %p358 = pneg %p357
      // Predicated region
      $region53: #{tpu_custom_call.1} parent=5 // pred_check
        _
      $region54: #{tpu_custom_call.1} parent=5 // pred_check_branch
        %360 = sbr.rel (%p357) target = $region56
      $region55: #{tpu_custom_call.1} parent=5 // pred_region
        %s361 = ssub.s32 %s23, 1
        %s362 = sand.u32 %s36, 1
        %s363 = scalar_lea.sflag [#allocation3], %s362
        %s364 = sand.u32 %s36, 1
        %s365 = smul.addr %s364, 32
        %s366 = scalar_lea.vmem [#allocation2], %s365
        // Predicated region
        $region57: #{tpu_custom_call.1} parent=55 // pred_check
          %p367 = pneg %p49
        $region58: #{tpu_custom_call.1} parent=55 // pred_check_branch
          %369 = sbr.rel (%p367) target = $region60
        $region59: #{tpu_custom_call.1} parent=55 // pred_region
          %370 = dma.done %s363, 512
        $region60: #{tpu_custom_call.1} parent=55 // pred_fallthru
          _
        // Predicated region
        $region61: #{tpu_custom_call.1} parent=55 // pred_check
          %p371 = pneg %p70
        $region62: #{tpu_custom_call.1} parent=55 // pred_check_branch
          %373 = sbr.rel (%p371) target = $region64
        $region63: #{tpu_custom_call.1} parent=55 // pred_region
          %374 = dma.done [#allocation6], 8192
        $region64: #{tpu_custom_call.1} parent=55 // pred_fallthru
          _
        // Predicated region
        $region65: #{tpu_custom_call.1} parent=55 // pred_check
          %p375 = pneg %p112
        $region66: #{tpu_custom_call.1} parent=55 // pred_check_branch
          %377 = sbr.rel (%p375) target = $region68
        $region67: #{tpu_custom_call.1} parent=55 // pred_region
          %378 = dma.done [#allocation6], 1024
        $region68: #{tpu_custom_call.1} parent=55 // pred_fallthru
          _
        // Predicated region
        $region69: #{tpu_custom_call.1} parent=55 // pred_check
          %p379 = pneg %p154
        $region70: #{tpu_custom_call.1} parent=55 // pred_check_branch
          %381 = sbr.rel (%p379) target = $region72
        $region71: #{tpu_custom_call.1} parent=55 // pred_region
          %382 = dma.done [#allocation9], 4096
        $region72: #{tpu_custom_call.1} parent=55 // pred_fallthru
          _
        // Predicated region
        $region73: #{tpu_custom_call.1} parent=55 // pred_check
          %p383 = pneg %p196
        $region74: #{tpu_custom_call.1} parent=55 // pred_check_branch
          %385 = sbr.rel (%p383) target = $region76
        $region75: #{tpu_custom_call.1} parent=55 // pred_region
          %386 = dma.done [#allocation9], 1024
        $region76: #{tpu_custom_call.1} parent=55 // pred_fallthru
          _
        %s387 = sand.u32 %s36, 1
        %s388 = scalar_lea.sflag [#allocation3], %s387
        %s389 = sand.u32 %s36, 1
        %s390 = smul.addr %s389, 32
        %s391 = scalar_lea.vmem [#allocation2], %s390
        %p392 = pneg %p49
        %p393 = pneg %p46
        %p394 = pneg %p70
        %p395 = pneg %p67
        %p396 = pneg %p91
        %p397 = pneg %p88
        %p398 = pneg %p112
        %p399 = pneg %p109
        %p400 = pneg %p133
        %p401 = pneg %p130
        %p402 = pneg %p154
        %p403 = pneg %p151
        %p404 = pneg %p175
        %p405 = pneg %p172
        %p406 = pneg %p196
        %p407 = pneg %p193
        %p408 = pneg %p217
        %p409 = pneg %p214
        %p410 = pneg %p243
        %p411 = pneg %p240
        %s412 = sand.u32 %s230, 1
        %s413 = scalar_lea.sflag [#allocation4], %s412
        %s414 = sand.u32 %s230, 1
        %s415 = smul.addr %s414, 16
        %s416 = scalar_lea.vmem [#allocation11], %s415
        %s417 = smul.u32 2, %s28
        %s418 = ssub.s32 3, %s417
        %p419 = scmp.lt.s32.totalorder %s418, 2
        %s420 = scalar_select %p419, %s418, 2
        %s421 = smul.u32 128, %s420
        %s422 = smul.u32 %s421, 2
        %s423 = smul.u32 2, %s28
        %s424 = ssub.s32 3, %s423
        %p425 = scmp.lt.s32.totalorder %s424, 2
        %s426 = scalar_select %p425, %s424, 2
        %s427 = smul.u32 128, %s426
        %v429 = vld [vmem:[%s366] sm:$0xff]
        %v430 = vld [vmem:[%s366 + $0x8] sm:$0xff]
        %v431 = vld [vmem:[%s366 + $0x10] sm:$0xff]
        %v432 = vld [vmem:[%s366 + $0x18] sm:$0xff]
        %v433 = vpack.c.bf16 %v431, %v429
        %v434 = vpack.c.bf16 %v432, %v430
        %v435 = vld [vmem:[#allocation5] sm:$0xff]
        %v436 = vld [vmem:[#allocation5 + $0x8] sm:$0xff]
        %v437 = vld [vmem:[#allocation5 + $0x10] sm:$0xff]
        %v438 = vld [vmem:[#allocation5 + $0x18] sm:$0xff]
        %v439 = vld [vmem:[#allocation5 + $0x20] sm:$0xff]
        %v440 = vld [vmem:[#allocation5 + $0x28] sm:$0xff]
        %v441 = vld [vmem:[#allocation5 + $0x30] sm:$0xff]
        %v442 = vld [vmem:[#allocation5 + $0x38] sm:$0xff]
        %v443 = vld [vmem:[#allocation5 + $0x40] sm:$0xff]
        %v444 = vld [vmem:[#allocation5 + $0x48] sm:$0xff]
        %v445 = vld [vmem:[#allocation5 + $0x50] sm:$0xff]
        %v446 = vld [vmem:[#allocation5 + $0x58] sm:$0xff]
        %v447 = vld [vmem:[#allocation5 + $0x60] sm:$0xff]
        %v448 = vld [vmem:[#allocation5 + $0x68] sm:$0xff]
        %v449 = vld [vmem:[#allocation5 + $0x70] sm:$0xff]
        %v450 = vld [vmem:[#allocation5 + $0x78] sm:$0xff]
        %v451 = vld [vmem:[#allocation5 + $0x80] sm:$0xff]
        %v452 = vld [vmem:[#allocation5 + $0x88] sm:$0xff]
        %v453 = vld [vmem:[#allocation5 + $0x90] sm:$0xff]
        %v454 = vld [vmem:[#allocation5 + $0x98] sm:$0xff]
        %v455 = vld [vmem:[#allocation5 + $0xa0] sm:$0xff]
        %v456 = vld [vmem:[#allocation5 + $0xa8] sm:$0xff]
        %v457 = vld [vmem:[#allocation5 + $0xb0] sm:$0xff]
        %v458 = vld [vmem:[#allocation5 + $0xb8] sm:$0xff]
        %v459 = vld [vmem:[#allocation5 + $0xc0] sm:$0xff]
        %v460 = vld [vmem:[#allocation5 + $0xc8] sm:$0xff]
        %v461 = vld [vmem:[#allocation5 + $0xd0] sm:$0xff]
        %v462 = vld [vmem:[#allocation5 + $0xd8] sm:$0xff]
        %v463 = vld [vmem:[#allocation5 + $0xe0] sm:$0xff]
        %v464 = vld [vmem:[#allocation5 + $0xe8] sm:$0xff]
        %v465 = vld [vmem:[#allocation5 + $0xf0] sm:$0xff]
        %v466 = vld [vmem:[#allocation5 + $0xf8] sm:$0xff]
        %v467 = vld [vmem:[#allocation5 + $0x100] sm:$0xff]
        %v468 = vld [vmem:[#allocation5 + $0x108] sm:$0xff]
        %v469 = vld [vmem:[#allocation5 + $0x110] sm:$0xff]
        %v470 = vld [vmem:[#allocation5 + $0x118] sm:$0xff]
        %v471 = vld [vmem:[#allocation5 + $0x120] sm:$0xff]
        %v472 = vld [vmem:[#allocation5 + $0x128] sm:$0xff]
        %v473 = vld [vmem:[#allocation5 + $0x130] sm:$0xff]
        %v474 = vld [vmem:[#allocation5 + $0x138] sm:$0xff]
        %v475 = vld [vmem:[#allocation5 + $0x140] sm:$0xff]
        %v476 = vld [vmem:[#allocation5 + $0x148] sm:$0xff]
        %v477 = vld [vmem:[#allocation5 + $0x150] sm:$0xff]
        %v478 = vld [vmem:[#allocation5 + $0x158] sm:$0xff]
        %v479 = vld [vmem:[#allocation5 + $0x160] sm:$0xff]
        %v480 = vld [vmem:[#allocation5 + $0x168] sm:$0xff]
        %v481 = vld [vmem:[#allocation5 + $0x170] sm:$0xff]
        %v482 = vld [vmem:[#allocation5 + $0x178] sm:$0xff]
        %v483 = vld [vmem:[#allocation5 + $0x180] sm:$0xff]
        %v484 = vld [vmem:[#allocation5 + $0x188] sm:$0xff]
        %v485 = vld [vmem:[#allocation5 + $0x190] sm:$0xff]
        %v486 = vld [vmem:[#allocation5 + $0x198] sm:$0xff]
        %v487 = vld [vmem:[#allocation5 + $0x1a0] sm:$0xff]
        %v488 = vld [vmem:[#allocation5 + $0x1a8] sm:$0xff]
        %v489 = vld [vmem:[#allocation5 + $0x1b0] sm:$0xff]
        %v490 = vld [vmem:[#allocation5 + $0x1b8] sm:$0xff]
        %v491 = vld [vmem:[#allocation5 + $0x1c0] sm:$0xff]
        %v492 = vld [vmem:[#allocation5 + $0x1c8] sm:$0xff]
        %v493 = vld [vmem:[#allocation5 + $0x1d0] sm:$0xff]
        %v494 = vld [vmem:[#allocation5 + $0x1d8] sm:$0xff]
        %v495 = vld [vmem:[#allocation5 + $0x1e0] sm:$0xff]
        %v496 = vld [vmem:[#allocation5 + $0x1e8] sm:$0xff]
        %v497 = vld [vmem:[#allocation5 + $0x1f0] sm:$0xff]
        %v498 = vld [vmem:[#allocation5 + $0x1f8] sm:$0xff]
        %v563 = vunpack.c.l.b16 %v435
        %v564 = vunpack.c.h.b16 %v435
        %v565 = vunpack.c.l.b16 %v436
        %v566 = vunpack.c.h.b16 %v436
        %v567 = vunpack.c.l.b16 %v437
        %v568 = vunpack.c.h.b16 %v437
        %v569 = vunpack.c.l.b16 %v438
        %v570 = vunpack.c.h.b16 %v438
        %v571 = vunpack.c.l.b16 %v439
        %v572 = vunpack.c.h.b16 %v439
        %v573 = vunpack.c.l.b16 %v440
        %v574 = vunpack.c.h.b16 %v440
        %v575 = vunpack.c.l.b16 %v441
        %v576 = vunpack.c.h.b16 %v441
        %v577 = vunpack.c.l.b16 %v442
        %v578 = vunpack.c.h.b16 %v442
        %v579 = vunpack.c.l.b16 %v443
        %v580 = vunpack.c.h.b16 %v443
        %v581 = vunpack.c.l.b16 %v444
        %v582 = vunpack.c.h.b16 %v444
        %v583 = vunpack.c.l.b16 %v445
        %v584 = vunpack.c.h.b16 %v445
        %v585 = vunpack.c.l.b16 %v446
        %v586 = vunpack.c.h.b16 %v446
        %v587 = vunpack.c.l.b16 %v447
        %v588 = vunpack.c.h.b16 %v447
        %v589 = vunpack.c.l.b16 %v448
        %v590 = vunpack.c.h.b16 %v448
        %v591 = vunpack.c.l.b16 %v449
        %v592 = vunpack.c.h.b16 %v449
        %v593 = vunpack.c.l.b16 %v450
        %v594 = vunpack.c.h.b16 %v450
        %v595 = vunpack.c.l.b16 %v451
        %v596 = vunpack.c.h.b16 %v451
        %v597 = vunpack.c.l.b16 %v452
        %v598 = vunpack.c.h.b16 %v452
        %v599 = vunpack.c.l.b16 %v453
        %v600 = vunpack.c.h.b16 %v453
        %v601 = vunpack.c.l.b16 %v454
        %v602 = vunpack.c.h.b16 %v454
        %v603 = vunpack.c.l.b16 %v455
        %v604 = vunpack.c.h.b16 %v455
        %v605 = vunpack.c.l.b16 %v456
        %v606 = vunpack.c.h.b16 %v456
        %v607 = vunpack.c.l.b16 %v457
        %v608 = vunpack.c.h.b16 %v457
        %v609 = vunpack.c.l.b16 %v458
        %v610 = vunpack.c.h.b16 %v458
        %v611 = vunpack.c.l.b16 %v459
        %v612 = vunpack.c.h.b16 %v459
        %v613 = vunpack.c.l.b16 %v460
        %v614 = vunpack.c.h.b16 %v460
        %v615 = vunpack.c.l.b16 %v461
        %v616 = vunpack.c.h.b16 %v461
        %v617 = vunpack.c.l.b16 %v462
        %v618 = vunpack.c.h.b16 %v462
        %v619 = vunpack.c.l.b16 %v463
        %v620 = vunpack.c.h.b16 %v463
        %v621 = vunpack.c.l.b16 %v464
        %v622 = vunpack.c.h.b16 %v464
        %v623 = vunpack.c.l.b16 %v465
        %v624 = vunpack.c.h.b16 %v465
        %v625 = vunpack.c.l.b16 %v466
        %v626 = vunpack.c.h.b16 %v466
        %v627 = vunpack.c.l.b16 %v467
        %v628 = vunpack.c.h.b16 %v467
        %v629 = vunpack.c.l.b16 %v468
        %v630 = vunpack.c.h.b16 %v468
        %v631 = vunpack.c.l.b16 %v469
        %v632 = vunpack.c.h.b16 %v469
        %v633 = vunpack.c.l.b16 %v470
        %v634 = vunpack.c.h.b16 %v470
        %v635 = vunpack.c.l.b16 %v471
        %v636 = vunpack.c.h.b16 %v471
        %v637 = vunpack.c.l.b16 %v472
        %v638 = vunpack.c.h.b16 %v472
        %v639 = vunpack.c.l.b16 %v473
        %v640 = vunpack.c.h.b16 %v473
        %v641 = vunpack.c.l.b16 %v474
        %v642 = vunpack.c.h.b16 %v474
        %v643 = vunpack.c.l.b16 %v475
        %v644 = vunpack.c.h.b16 %v475
        %v645 = vunpack.c.l.b16 %v476
        %v646 = vunpack.c.h.b16 %v476
        %v647 = vunpack.c.l.b16 %v477
        %v648 = vunpack.c.h.b16 %v477
        %v649 = vunpack.c.l.b16 %v478
        %v650 = vunpack.c.h.b16 %v478
        %v651 = vunpack.c.l.b16 %v479
        %v652 = vunpack.c.h.b16 %v479
        %v653 = vunpack.c.l.b16 %v480
        %v654 = vunpack.c.h.b16 %v480
        %v655 = vunpack.c.l.b16 %v481
        %v656 = vunpack.c.h.b16 %v481
        %v657 = vunpack.c.l.b16 %v482
        %v658 = vunpack.c.h.b16 %v482
        %v659 = vunpack.c.l.b16 %v483
        %v660 = vunpack.c.h.b16 %v483
        %v661 = vunpack.c.l.b16 %v484
        %v662 = vunpack.c.h.b16 %v484
        %v663 = vunpack.c.l.b16 %v485
        %v664 = vunpack.c.h.b16 %v485
        %v665 = vunpack.c.l.b16 %v486
        %v666 = vunpack.c.h.b16 %v486
        %v667 = vunpack.c.l.b16 %v487
        %v668 = vunpack.c.h.b16 %v487
        %v669 = vunpack.c.l.b16 %v488
        %v670 = vunpack.c.h.b16 %v488
        %v671 = vunpack.c.l.b16 %v489
        %v672 = vunpack.c.h.b16 %v489
        %v673 = vunpack.c.l.b16 %v490
        %v674 = vunpack.c.h.b16 %v490
        %v675 = vunpack.c.l.b16 %v491
        %v676 = vunpack.c.h.b16 %v491
        %v677 = vunpack.c.l.b16 %v492
        %v678 = vunpack.c.h.b16 %v492
        %v679 = vunpack.c.l.b16 %v493
        %v680 = vunpack.c.h.b16 %v493
        %v681 = vunpack.c.l.b16 %v494
        %v682 = vunpack.c.h.b16 %v494
        %v683 = vunpack.c.l.b16 %v495
        %v684 = vunpack.c.h.b16 %v495
        %v685 = vunpack.c.l.b16 %v496
        %v686 = vunpack.c.h.b16 %v496
        %v687 = vunpack.c.l.b16 %v497
        %v688 = vunpack.c.h.b16 %v497
        %v689 = vunpack.c.l.b16 %v498
        %v690 = vunpack.c.h.b16 %v498
        %v691 = vpack.c.b16 %v567, %v563
        %v692 = vpack.c.b16 %v568, %v564
        %v693 = vpack.c.b16 %v569, %v565
        %v694 = vpack.c.b16 %v570, %v566
        %v695 = vpack.c.b16 %v575, %v571
        %v696 = vpack.c.b16 %v576, %v572
        %v697 = vpack.c.b16 %v577, %v573
        %v698 = vpack.c.b16 %v578, %v574
        %v699 = vpack.c.b16 %v583, %v579
        %v700 = vpack.c.b16 %v584, %v580
        %v701 = vpack.c.b16 %v585, %v581
        %v702 = vpack.c.b16 %v586, %v582
        %v703 = vpack.c.b16 %v591, %v587
        %v704 = vpack.c.b16 %v592, %v588
        %v705 = vpack.c.b16 %v593, %v589
        %v706 = vpack.c.b16 %v594, %v590
        %v707 = vpack.c.b16 %v599, %v595
        %v708 = vpack.c.b16 %v600, %v596
        %v709 = vpack.c.b16 %v601, %v597
        %v710 = vpack.c.b16 %v602, %v598
        %v711 = vpack.c.b16 %v607, %v603
        %v712 = vpack.c.b16 %v608, %v604
        %v713 = vpack.c.b16 %v609, %v605
        %v714 = vpack.c.b16 %v610, %v606
        %v715 = vpack.c.b16 %v615, %v611
        %v716 = vpack.c.b16 %v616, %v612
        %v717 = vpack.c.b16 %v617, %v613
        %v718 = vpack.c.b16 %v618, %v614
        %v719 = vpack.c.b16 %v623, %v619
        %v720 = vpack.c.b16 %v624, %v620
        %v721 = vpack.c.b16 %v625, %v621
        %v722 = vpack.c.b16 %v626, %v622
        %v723 = vpack.c.b16 %v631, %v627
        %v724 = vpack.c.b16 %v632, %v628
        %v725 = vpack.c.b16 %v633, %v629
        %v726 = vpack.c.b16 %v634, %v630
        %v727 = vpack.c.b16 %v639, %v635
        %v728 = vpack.c.b16 %v640, %v636
        %v729 = vpack.c.b16 %v641, %v637
        %v730 = vpack.c.b16 %v642, %v638
        %v731 = vpack.c.b16 %v647, %v643
        %v732 = vpack.c.b16 %v648, %v644
        %v733 = vpack.c.b16 %v649, %v645
        %v734 = vpack.c.b16 %v650, %v646
        %v735 = vpack.c.b16 %v655, %v651
        %v736 = vpack.c.b16 %v656, %v652
        %v737 = vpack.c.b16 %v657, %v653
        %v738 = vpack.c.b16 %v658, %v654
        %v739 = vpack.c.b16 %v663, %v659
        %v740 = vpack.c.b16 %v664, %v660
        %v741 = vpack.c.b16 %v665, %v661
        %v742 = vpack.c.b16 %v666, %v662
        %v743 = vpack.c.b16 %v671, %v667
        %v744 = vpack.c.b16 %v672, %v668
        %v745 = vpack.c.b16 %v673, %v669
        %v746 = vpack.c.b16 %v674, %v670
        %v747 = vpack.c.b16 %v679, %v675
        %v748 = vpack.c.b16 %v680, %v676
        %v749 = vpack.c.b16 %v681, %v677
        %v750 = vpack.c.b16 %v682, %v678
        %v751 = vpack.c.b16 %v687, %v683
        %v752 = vpack.c.b16 %v688, %v684
        %v753 = vpack.c.b16 %v689, %v685
        %v754 = vpack.c.b16 %v690, %v686
        %819 = vmatprep.subr.bf16.mxu0 %v692
        %820 = vmatpush1.bf16.msra.mxu0 %v691
        %821 = vmatprep.subr.bf16.mxu0 %v696
        %822 = vmatpush1.bf16.msra.mxu0 %v695
        %823 = vmatprep.subr.bf16.mxu0 %v700
        %824 = vmatpush1.bf16.msra.mxu0 %v699
        %825 = vmatprep.subr.bf16.mxu0 %v704
        %826 = vmatpush1.bf16.msra.mxu0 %v703
        %827 = vmatprep.subr.bf16.mxu0 %v708
        %828 = vmatpush1.bf16.msra.mxu0 %v707
        %829 = vmatprep.subr.bf16.mxu0 %v712
        %830 = vmatpush1.bf16.msra.mxu0 %v711
        %831 = vmatprep.subr.bf16.mxu0 %v716
        %832 = vmatpush1.bf16.msra.mxu0 %v715
        %833 = vmatprep.subr.bf16.mxu0 %v720
        %834 = vmatpush1.bf16.msra.mxu0 %v719
        %835 = vmatprep.subr.bf16.mxu0 %v724
        %836 = vmatpush1.bf16.msra.mxu0 %v723
        %837 = vmatprep.subr.bf16.mxu0 %v728
        %838 = vmatpush1.bf16.msra.mxu0 %v727
        %839 = vmatprep.subr.bf16.mxu0 %v732
        %840 = vmatpush1.bf16.msra.mxu0 %v731
        %841 = vmatprep.subr.bf16.mxu0 %v736
        %842 = vmatpush1.bf16.msra.mxu0 %v735
        %843 = vmatprep.subr.bf16.mxu0 %v740
        %844 = vmatpush1.bf16.msra.mxu0 %v739
        %845 = vmatprep.subr.bf16.mxu0 %v744
        %846 = vmatpush1.bf16.msra.mxu0 %v743
        %847 = vmatprep.subr.bf16.mxu0 %v748
        %848 = vmatpush1.bf16.msra.mxu0 %v747
        %849 = vmatprep.subr.bf16.mxu0 %v752
        %850 = vmatpush1.bf16.msra.mxu0 %v751
        %851 = vmatprep.mubr.bf16.mxu0 %v434
        %852 = vmatmul.mubr.bf16.gmra.mrb[0].mxu0 %v433
        %v853 = vpop.f32.mrb[0].mxu0
        %v854 = vadd.f32 0.0, %v853
        %v855 = vpop.f32.mrb[0].mxu0
        %v856 = vadd.f32 0.0, %v855
        %v857 = vpop.f32.mrb[0].mxu0
        %v858 = vadd.f32 0.0, %v857
        %v859 = vpop.f32.mrb[0].mxu0
        %v860 = vadd.f32 0.0, %v859
        %861 = vdwg.mxu0
        %862 = vmatprep.subr.bf16.mxu0 %v694
        %863 = vmatpush1.bf16.msra.mxu0 %v693
        %864 = vmatprep.subr.bf16.mxu0 %v698
        %865 = vmatpush1.bf16.msra.mxu0 %v697
        %866 = vmatprep.subr.bf16.mxu0 %v702
        %867 = vmatpush1.bf16.msra.mxu0 %v701
        %868 = vmatprep.subr.bf16.mxu0 %v706
        %869 = vmatpush1.bf16.msra.mxu0 %v705
        %870 = vmatprep.subr.bf16.mxu0 %v710
        %871 = vmatpush1.bf16.msra.mxu0 %v709
        %872 = vmatprep.subr.bf16.mxu0 %v714
        %873 = vmatpush1.bf16.msra.mxu0 %v713
        %874 = vmatprep.subr.bf16.mxu0 %v718
        %875 = vmatpush1.bf16.msra.mxu0 %v717
        %876 = vmatprep.subr.bf16.mxu0 %v722
        %877 = vmatpush1.bf16.msra.mxu0 %v721
        %878 = vmatprep.subr.bf16.mxu0 %v726
        %879 = vmatpush1.bf16.msra.mxu0 %v725
        %880 = vmatprep.subr.bf16.mxu0 %v730
        %881 = vmatpush1.bf16.msra.mxu0 %v729
        %882 = vmatprep.subr.bf16.mxu0 %v734
        %883 = vmatpush1.bf16.msra.mxu0 %v733
        %884 = vmatprep.subr.bf16.mxu0 %v738
        %885 = vmatpush1.bf16.msra.mxu0 %v737
        %886 = vmatprep.subr.bf16.mxu0 %v742
        %887 = vmatpush1.bf16.msra.mxu0 %v741
        %888 = vmatprep.subr.bf16.mxu0 %v746
        %889 = vmatpush1.bf16.msra.mxu0 %v745
        %890 = vmatprep.subr.bf16.mxu0 %v750
        %891 = vmatpush1.bf16.msra.mxu0 %v749
        %892 = vmatprep.subr.bf16.mxu0 %v754
        %893 = vmatpush1.bf16.msra.mxu0 %v753
        %894 = vmatprep.mubr.bf16.mxu0 %v434
        %895 = vmatmul.mubr.bf16.gmra.mrb[0].mxu0 %v433
        %v896 = vpop.f32.mrb[0].mxu0
        %v897 = vadd.f32 0.0, %v896
        %v898 = vpop.f32.mrb[0].mxu0
        %v899 = vadd.f32 0.0, %v898
        %v900 = vpop.f32.mrb[0].mxu0
        %v901 = vadd.f32 0.0, %v900
        %v902 = vpop.f32.mrb[0].mxu0
        %v903 = vadd.f32 0.0, %v902
        %904 = vdwg.mxu0
        %v905 = vmax.f32 %v854, %v856
        %v906 = vmax.f32 %v858, %v860
        %v907 = vmax.f32 %v897, %v899
        %v908 = vmax.f32 %v901, %v903
        %v909 = vmax.f32 %v905, %v907
        %v910 = vmax.f32 %v906, %v908
        %v911 = vld [vmem:[%s2] sm:$0x1]
        %v913 = vlaneseq
        %v914 = vshrl.u32 %v913, 7
        %v915 = vsub.s32 0, %v914
        %v916 = vrot.slane %v911, %v915
        %v918 = vadd.f32 %v909, %v916
        %v919 = vadd.f32 %v910, %v916
        %v920 = vmax.f32 %v918, 0.0
        %v921 = vmax.f32 %v919, 0.0
        %v922 = vpack.c.bf16 %v921, %v920
        %v923 = vld [vmem:[#allocation7] sm:$0xf]
        %v924 = vld [vmem:[#allocation7 + $0x4] sm:$0xf]
        %v925 = vld [vmem:[#allocation7 + $0x8] sm:$0xf]
        %v926 = vld [vmem:[#allocation7 + $0xc] sm:$0xf]
        %v927 = vld [vmem:[#allocation7 + $0x10] sm:$0xf]
        %v928 = vld [vmem:[#allocation7 + $0x14] sm:$0xf]
        %v929 = vld [vmem:[#allocation7 + $0x18] sm:$0xf]
        %v930 = vld [vmem:[#allocation7 + $0x1c] sm:$0xf]
        %v931 = vld [vmem:[#allocation7 + $0x20] sm:$0xf]
        %v932 = vld [vmem:[#allocation7 + $0x24] sm:$0xf]
        %v933 = vld [vmem:[#allocation7 + $0x28] sm:$0xf]
        %v934 = vld [vmem:[#allocation7 + $0x2c] sm:$0xf]
        %v935 = vld [vmem:[#allocation7 + $0x30] sm:$0xf]
        %v936 = vld [vmem:[#allocation7 + $0x34] sm:$0xf]
        %v937 = vld [vmem:[#allocation7 + $0x38] sm:$0xf]
        %v938 = vld [vmem:[#allocation7 + $0x3c] sm:$0xf]
        %v939 = vld [vmem:[%s4] sm:$0x1]
        %v941 = vlaneseq
        %v942 = vshrl.u32 %v941, 7
        %v943 = vsub.s32 0, %v942
        %v944 = vrot.slane %v939, %v943
        %v962 = vunpack.c.l.b16 %v923
        %v963 = vunpack.c.l.b16 %v924
        %v964 = vunpack.c.l.b16 %v925
        %v965 = vunpack.c.l.b16 %v926
        %v966 = vunpack.c.l.b16 %v927
        %v967 = vunpack.c.l.b16 %v928
        %v968 = vunpack.c.l.b16 %v929
        %v969 = vunpack.c.l.b16 %v930
        %v970 = vunpack.c.l.b16 %v931
        %v971 = vunpack.c.l.b16 %v932
        %v972 = vunpack.c.l.b16 %v933
        %v973 = vunpack.c.l.b16 %v934
        %v974 = vunpack.c.l.b16 %v935
        %v975 = vunpack.c.l.b16 %v936
        %v976 = vunpack.c.l.b16 %v937
        %v977 = vunpack.c.l.b16 %v938
        %v978 = vpack.c.b16 %v963, %v962
        %v979 = vpack.c.b16 %v965, %v964
        %v980 = vpack.c.b16 %v967, %v966
        %v981 = vpack.c.b16 %v969, %v968
        %v982 = vpack.c.b16 %v971, %v970
        %v983 = vpack.c.b16 %v973, %v972
        %v984 = vpack.c.b16 %v975, %v974
        %v985 = vpack.c.b16 %v977, %v976
        %994 = vmatprep.subr.bf16.mxu0 0
        %995 = vmatpush1.bf16.msra.mxu0 %v978
        %996 = vmatprep.subr.bf16.mxu0 0
        %997 = vmatpush1.bf16.msra.mxu0 %v979
        %998 = vmatprep.subr.bf16.mxu0 0
        %999 = vmatpush1.bf16.msra.mxu0 %v980
        %1000 = vmatprep.subr.bf16.mxu0 0
        %1001 = vmatpush1.bf16.msra.mxu0 %v981
        %1002 = vmatprep.subr.bf16.mxu0 0
        %1003 = vmatpush1.bf16.msra.mxu0 %v982
        %1004 = vmatprep.subr.bf16.mxu0 0
        %1005 = vmatpush1.bf16.msra.mxu0 %v983
        %1006 = vmatprep.subr.bf16.mxu0 0
        %1007 = vmatpush1.bf16.msra.mxu0 %v984
        %1008 = vmatprep.subr.bf16.mxu0 0
        %1009 = vmatpush1.bf16.msra.mxu0 %v985
        %1010 = vmatprep.subr.bf16.mxu0 0
        %1011 = vmatpush1.bf16.msra.mxu0 0
        %1012 = vmatprep.subr.bf16.mxu0 0
        %1013 = vmatpush1.bf16.msra.mxu0 0
        %1014 = vmatprep.subr.bf16.mxu0 0
        %1015 = vmatpush1.bf16.msra.mxu0 0
        %1016 = vmatprep.subr.bf16.mxu0 0
        %1017 = vmatpush1.bf16.msra.mxu0 0
        %1018 = vmatprep.subr.bf16.mxu0 0
        %1019 = vmatpush1.bf16.msra.mxu0 0
        %1020 = vmatprep.subr.bf16.mxu0 0
        %1021 = vmatpush1.bf16.msra.mxu0 0
        %1022 = vmatprep.subr.bf16.mxu0 0
        %1023 = vmatpush1.bf16.msra.mxu0 0
        %1024 = vmatprep.subr.bf16.mxu0 0
        %1025 = vmatpush1.bf16.msra.mxu0 0
        %1026 = vmatprep.mubr.bf16.mxu0 0
        %1027 = vmatmul.mubr.bf16.gmra.mrb[0].mxu0 %v922
        %v1028 = vpop.f32.mrb[0].mxu0
        %v1029 = vadd.f32 %v944, %v1028
        %v1030 = vpop.f32.mrb[0].mxu0
        %v1031 = vpop.f32.mrb[0].mxu0
        %v1032 = vadd.f32 %v944, %v1031
        %v1033 = vpop.f32.mrb[0].mxu0
        %1034 = vdwg.mxu0
        %v1035 = vmax.f32 %v1029, 0.0
        %v1036 = vmax.f32 %v1032, 0.0
        %v1037 = vpack.c.bf16 %v1036, %v1035
        %v1038 = vld [vmem:[#allocation8] sm:$0xff]
        %v1039 = vld [vmem:[#allocation8 + $0x8] sm:$0xff]
        %v1040 = vld [vmem:[#allocation8 + $0x10] sm:$0xff]
        %v1041 = vld [vmem:[#allocation8 + $0x18] sm:$0xff]
        %v1042 = vld [vmem:[#allocation8 + $0x20] sm:$0xff]
        %v1043 = vld [vmem:[#allocation8 + $0x28] sm:$0xff]
        %v1044 = vld [vmem:[#allocation8 + $0x30] sm:$0xff]
        %v1045 = vld [vmem:[#allocation8 + $0x38] sm:$0xff]
        %v1046 = vld [vmem:[#allocation8 + $0x40] sm:$0xff]
        %v1047 = vld [vmem:[#allocation8 + $0x48] sm:$0xff]
        %v1048 = vld [vmem:[#allocation8 + $0x50] sm:$0xff]
        %v1049 = vld [vmem:[#allocation8 + $0x58] sm:$0xff]
        %v1050 = vld [vmem:[#allocation8 + $0x60] sm:$0xff]
        %v1051 = vld [vmem:[#allocation8 + $0x68] sm:$0xff]
        %v1052 = vld [vmem:[#allocation8 + $0x70] sm:$0xff]
        %v1053 = vld [vmem:[#allocation8 + $0x78] sm:$0xff]
        %v1054 = vld [vmem:[#allocation8 + $0x80] sm:$0xff]
        %v1055 = vld [vmem:[#allocation8 + $0x88] sm:$0xff]
        %v1056 = vld [vmem:[#allocation8 + $0x90] sm:$0xff]
        %v1057 = vld [vmem:[#allocation8 + $0x98] sm:$0xff]
        %v1058 = vld [vmem:[#allocation8 + $0xa0] sm:$0xff]
        %v1059 = vld [vmem:[#allocation8 + $0xa8] sm:$0xff]
        %v1060 = vld [vmem:[#allocation8 + $0xb0] sm:$0xff]
        %v1061 = vld [vmem:[#allocation8 + $0xb8] sm:$0xff]
        %v1062 = vld [vmem:[#allocation8 + $0xc0] sm:$0xff]
        %v1063 = vld [vmem:[#allocation8 + $0xc8] sm:$0xff]
        %v1064 = vld [vmem:[#allocation8 + $0xd0] sm:$0xff]
        %v1065 = vld [vmem:[#allocation8 + $0xd8] sm:$0xff]
        %v1066 = vld [vmem:[#allocation8 + $0xe0] sm:$0xff]
        %v1067 = vld [vmem:[#allocation8 + $0xe8] sm:$0xff]
        %v1068 = vld [vmem:[#allocation8 + $0xf0] sm:$0xff]
        %v1069 = vld [vmem:[#allocation8 + $0xf8] sm:$0xff]
        %v1102 = vunpack.c.l.b16 %v1038
        %v1103 = vunpack.c.h.b16 %v1038
        %v1104 = vunpack.c.l.b16 %v1039
        %v1105 = vunpack.c.h.b16 %v1039
        %v1106 = vunpack.c.l.b16 %v1040
        %v1107 = vunpack.c.h.b16 %v1040
        %v1108 = vunpack.c.l.b16 %v1041
        %v1109 = vunpack.c.h.b16 %v1041
        %v1110 = vunpack.c.l.b16 %v1042
        %v1111 = vunpack.c.h.b16 %v1042
        %v1112 = vunpack.c.l.b16 %v1043
        %v1113 = vunpack.c.h.b16 %v1043
        %v1114 = vunpack.c.l.b16 %v1044
        %v1115 = vunpack.c.h.b16 %v1044
        %v1116 = vunpack.c.l.b16 %v1045
        %v1117 = vunpack.c.h.b16 %v1045
        %v1118 = vunpack.c.l.b16 %v1046
        %v1119 = vunpack.c.h.b16 %v1046
        %v1120 = vunpack.c.l.b16 %v1047
        %v1121 = vunpack.c.h.b16 %v1047
        %v1122 = vunpack.c.l.b16 %v1048
        %v1123 = vunpack.c.h.b16 %v1048
        %v1124 = vunpack.c.l.b16 %v1049
        %v1125 = vunpack.c.h.b16 %v1049
        %v1126 = vunpack.c.l.b16 %v1050
        %v1127 = vunpack.c.h.b16 %v1050
        %v1128 = vunpack.c.l.b16 %v1051
        %v1129 = vunpack.c.h.b16 %v1051
        %v1130 = vunpack.c.l.b16 %v1052
        %v1131 = vunpack.c.h.b16 %v1052
        %v1132 = vunpack.c.l.b16 %v1053
        %v1133 = vunpack.c.h.b16 %v1053
        %v1134 = vunpack.c.l.b16 %v1054
        %v1135 = vunpack.c.h.b16 %v1054
        %v1136 = vunpack.c.l.b16 %v1055
        %v1137 = vunpack.c.h.b16 %v1055
        %v1138 = vunpack.c.l.b16 %v1056
        %v1139 = vunpack.c.h.b16 %v1056
        %v1140 = vunpack.c.l.b16 %v1057
        %v1141 = vunpack.c.h.b16 %v1057
        %v1142 = vunpack.c.l.b16 %v1058
        %v1143 = vunpack.c.h.b16 %v1058
        %v1144 = vunpack.c.l.b16 %v1059
        %v1145 = vunpack.c.h.b16 %v1059
        %v1146 = vunpack.c.l.b16 %v1060
        %v1147 = vunpack.c.h.b16 %v1060
        %v1148 = vunpack.c.l.b16 %v1061
        %v1149 = vunpack.c.h.b16 %v1061
        %v1150 = vunpack.c.l.b16 %v1062
        %v1151 = vunpack.c.h.b16 %v1062
        %v1152 = vunpack.c.l.b16 %v1063
        %v1153 = vunpack.c.h.b16 %v1063
        %v1154 = vunpack.c.l.b16 %v1064
        %v1155 = vunpack.c.h.b16 %v1064
        %v1156 = vunpack.c.l.b16 %v1065
        %v1157 = vunpack.c.h.b16 %v1065
        %v1158 = vunpack.c.l.b16 %v1066
        %v1159 = vunpack.c.h.b16 %v1066
        %v1160 = vunpack.c.l.b16 %v1067
        %v1161 = vunpack.c.h.b16 %v1067
        %v1162 = vunpack.c.l.b16 %v1068
        %v1163 = vunpack.c.h.b16 %v1068
        %v1164 = vunpack.c.l.b16 %v1069
        %v1165 = vunpack.c.h.b16 %v1069
        %v1166 = vpack.c.b16 %v1106, %v1102
        %v1167 = vpack.c.b16 %v1107, %v1103
        %v1168 = vpack.c.b16 %v1108, %v1104
        %v1169 = vpack.c.b16 %v1109, %v1105
        %v1170 = vpack.c.b16 %v1114, %v1110
        %v1171 = vpack.c.b16 %v1115, %v1111
        %v1172 = vpack.c.b16 %v1116, %v1112
        %v1173 = vpack.c.b16 %v1117, %v1113
        %v1174 = vpack.c.b16 %v1122, %v1118
        %v1175 = vpack.c.b16 %v1123, %v1119
        %v1176 = vpack.c.b16 %v1124, %v1120
        %v1177 = vpack.c.b16 %v1125, %v1121
        %v1178 = vpack.c.b16 %v1130, %v1126
        %v1179 = vpack.c.b16 %v1131, %v1127
        %v1180 = vpack.c.b16 %v1132, %v1128
        %v1181 = vpack.c.b16 %v1133, %v1129
        %v1182 = vpack.c.b16 %v1138, %v1134
        %v1183 = vpack.c.b16 %v1139, %v1135
        %v1184 = vpack.c.b16 %v1140, %v1136
        %v1185 = vpack.c.b16 %v1141, %v1137
        %v1186 = vpack.c.b16 %v1146, %v1142
        %v1187 = vpack.c.b16 %v1147, %v1143
        %v1188 = vpack.c.b16 %v1148, %v1144
        %v1189 = vpack.c.b16 %v1149, %v1145
        %v1190 = vpack.c.b16 %v1154, %v1150
        %v1191 = vpack.c.b16 %v1155, %v1151
        %v1192 = vpack.c.b16 %v1156, %v1152
        %v1193 = vpack.c.b16 %v1157, %v1153
        %v1194 = vpack.c.b16 %v1162, %v1158
        %v1195 = vpack.c.b16 %v1163, %v1159
        %v1196 = vpack.c.b16 %v1164, %v1160
        %v1197 = vpack.c.b16 %v1165, %v1161
        %1230 = vmatprep.subr.bf16.mxu0 %v1167
        %1231 = vmatpush1.bf16.msra.mxu0 %v1166
        %1232 = vmatprep.subr.bf16.mxu0 %v1171
        %1233 = vmatpush1.bf16.msra.mxu0 %v1170
        %1234 = vmatprep.subr.bf16.mxu0 %v1175
        %1235 = vmatpush1.bf16.msra.mxu0 %v1174
        %1236 = vmatprep.subr.bf16.mxu0 %v1179
        %1237 = vmatpush1.bf16.msra.mxu0 %v1178
        %1238 = vmatprep.subr.bf16.mxu0 %v1183
        %1239 = vmatpush1.bf16.msra.mxu0 %v1182
        %1240 = vmatprep.subr.bf16.mxu0 %v1187
        %1241 = vmatpush1.bf16.msra.mxu0 %v1186
        %1242 = vmatprep.subr.bf16.mxu0 %v1191
        %1243 = vmatpush1.bf16.msra.mxu0 %v1190
        %1244 = vmatprep.subr.bf16.mxu0 %v1195
        %1245 = vmatpush1.bf16.msra.mxu0 %v1194
        %1246 = vmatprep.subr.bf16.mxu0 0
        %1247 = vmatpush1.bf16.msra.mxu0 0
        %1248 = vmatprep.subr.bf16.mxu0 0
        %1249 = vmatpush1.bf16.msra.mxu0 0
        %1250 = vmatprep.subr.bf16.mxu0 0
        %1251 = vmatpush1.bf16.msra.mxu0 0
        %1252 = vmatprep.subr.bf16.mxu0 0
        %1253 = vmatpush1.bf16.msra.mxu0 0
        %1254 = vmatprep.subr.bf16.mxu0 0
        %1255 = vmatpush1.bf16.msra.mxu0 0
        %1256 = vmatprep.subr.bf16.mxu0 0
        %1257 = vmatpush1.bf16.msra.mxu0 0
        %1258 = vmatprep.subr.bf16.mxu0 0
        %1259 = vmatpush1.bf16.msra.mxu0 0
        %1260 = vmatprep.subr.bf16.mxu0 0
        %1261 = vmatpush1.bf16.msra.mxu0 0
        %1262 = vmatprep.mubr.bf16.mxu0 0
        %1263 = vmatmul.mubr.bf16.gmra.mrb[0].mxu0 %v1037
        %v1264 = vpop.f32.mrb[0].mxu0
        %v1265 = vadd.f32 0.0, %v1264
        %v1266 = vpop.f32.mrb[0].mxu0
        %v1267 = vadd.f32 0.0, %v1266
        %v1268 = vpop.f32.mrb[0].mxu0
        %v1269 = vadd.f32 0.0, %v1268
        %v1270 = vpop.f32.mrb[0].mxu0
        %v1271 = vadd.f32 0.0, %v1270
        %1272 = vdwg.mxu0
        %1273 = vmatprep.subr.bf16.mxu0 %v1169
        %1274 = vmatpush1.bf16.msra.mxu0 %v1168
        %1275 = vmatprep.subr.bf16.mxu0 %v1173
        %1276 = vmatpush1.bf16.msra.mxu0 %v1172
        %1277 = vmatprep.subr.bf16.mxu0 %v1177
        %1278 = vmatpush1.bf16.msra.mxu0 %v1176
        %1279 = vmatprep.subr.bf16.mxu0 %v1181
        %1280 = vmatpush1.bf16.msra.mxu0 %v1180
        %1281 = vmatprep.subr.bf16.mxu0 %v1185
        %1282 = vmatpush1.bf16.msra.mxu0 %v1184
        %1283 = vmatprep.subr.bf16.mxu0 %v1189
        %1284 = vmatpush1.bf16.msra.mxu0 %v1188
        %1285 = vmatprep.subr.bf16.mxu0 %v1193
        %1286 = vmatpush1.bf16.msra.mxu0 %v1192
        %1287 = vmatprep.subr.bf16.mxu0 %v1197
        %1288 = vmatpush1.bf16.msra.mxu0 %v1196
        %1289 = vmatprep.subr.bf16.mxu0 0
        %1290 = vmatpush1.bf16.msra.mxu0 0
        %1291 = vmatprep.subr.bf16.mxu0 0
        %1292 = vmatpush1.bf16.msra.mxu0 0
        %1293 = vmatprep.subr.bf16.mxu0 0
        %1294 = vmatpush1.bf16.msra.mxu0 0
        %1295 = vmatprep.subr.bf16.mxu0 0
        %1296 = vmatpush1.bf16.msra.mxu0 0
        %1297 = vmatprep.subr.bf16.mxu0 0
        %1298 = vmatpush1.bf16.msra.mxu0 0
        %1299 = vmatprep.subr.bf16.mxu0 0
        %1300 = vmatpush1.bf16.msra.mxu0 0
        %1301 = vmatprep.subr.bf16.mxu0 0
        %1302 = vmatpush1.bf16.msra.mxu0 0
        %1303 = vmatprep.subr.bf16.mxu0 0
        %1304 = vmatpush1.bf16.msra.mxu0 0
        %1305 = vmatprep.mubr.bf16.mxu0 0
        %1306 = vmatmul.mubr.bf16.gmra.mrb[0].mxu0 %v1037
        %v1307 = vpop.f32.mrb[0].mxu0
        %v1308 = vadd.f32 0.0, %v1307
        %v1309 = vpop.f32.mrb[0].mxu0
        %v1310 = vadd.f32 0.0, %v1309
        %v1311 = vpop.f32.mrb[0].mxu0
        %v1312 = vadd.f32 0.0, %v1311
        %v1313 = vpop.f32.mrb[0].mxu0
        %v1314 = vadd.f32 0.0, %v1313
        %1315 = vdwg.mxu0
        %v1316 = vmax.f32 %v1265, %v1267
        %v1317 = vmax.f32 %v1269, %v1271
        %v1318 = vmax.f32 %v1308, %v1310
        %v1319 = vmax.f32 %v1312, %v1314
        %v1320 = vmax.f32 %v1316, %v1318
        %v1321 = vmax.f32 %v1317, %v1319
        %v1322 = vld [vmem:[%s6] sm:$0x1]
        %v1324 = vlaneseq
        %v1325 = vshrl.u32 %v1324, 7
        %v1326 = vsub.s32 0, %v1325
        %v1327 = vrot.slane %v1322, %v1326
        %v1329 = vadd.f32 %v1320, %v1327
        %v1330 = vadd.f32 %v1321, %v1327
        %v1331 = vmax.f32 %v1329, 0.0
        %v1332 = vmax.f32 %v1330, 0.0
        %v1333 = vpack.c.bf16 %v1332, %v1331
        %v1334 = vld [vmem:[#allocation10] sm:$0xf]
        %v1335 = vld [vmem:[#allocation10 + $0x4] sm:$0xf]
        %v1336 = vld [vmem:[#allocation10 + $0x8] sm:$0xf]
        %v1337 = vld [vmem:[#allocation10 + $0xc] sm:$0xf]
        %v1338 = vld [vmem:[#allocation10 + $0x10] sm:$0xf]
        %v1339 = vld [vmem:[#allocation10 + $0x14] sm:$0xf]
        %v1340 = vld [vmem:[#allocation10 + $0x18] sm:$0xf]
        %v1341 = vld [vmem:[#allocation10 + $0x1c] sm:$0xf]
        %v1342 = vld [vmem:[#allocation10 + $0x20] sm:$0xf]
        %v1343 = vld [vmem:[#allocation10 + $0x24] sm:$0xf]
        %v1344 = vld [vmem:[#allocation10 + $0x28] sm:$0xf]
        %v1345 = vld [vmem:[#allocation10 + $0x2c] sm:$0xf]
        %v1346 = vld [vmem:[#allocation10 + $0x30] sm:$0xf]
        %v1347 = vld [vmem:[#allocation10 + $0x34] sm:$0xf]
        %v1348 = vld [vmem:[#allocation10 + $0x38] sm:$0xf]
        %v1349 = vld [vmem:[#allocation10 + $0x3c] sm:$0xf]
        %v1350 = vld [vmem:[%s8] sm:$0x1]
        %v1352 = vlaneseq
        %v1353 = vshrl.u32 %v1352, 7
        %v1354 = vsub.s32 0, %v1353
        %v1355 = vrot.slane %v1350, %v1354
        %v1373 = vunpack.c.l.b16 %v1334
        %v1374 = vunpack.c.l.b16 %v1335
        %v1375 = vunpack.c.l.b16 %v1336
        %v1376 = vunpack.c.l.b16 %v1337
        %v1377 = vunpack.c.l.b16 %v1338
        %v1378 = vunpack.c.l.b16 %v1339
        %v1379 = vunpack.c.l.b16 %v1340
        %v1380 = vunpack.c.l.b16 %v1341
        %v1381 = vunpack.c.l.b16 %v1342
        %v1382 = vunpack.c.l.b16 %v1343
        %v1383 = vunpack.c.l.b16 %v1344
        %v1384 = vunpack.c.l.b16 %v1345
        %v1385 = vunpack.c.l.b16 %v1346
        %v1386 = vunpack.c.l.b16 %v1347
        %v1387 = vunpack.c.l.b16 %v1348
        %v1388 = vunpack.c.l.b16 %v1349
        %v1389 = vpack.c.b16 %v1374, %v1373
        %v1390 = vpack.c.b16 %v1376, %v1375
        %v1391 = vpack.c.b16 %v1378, %v1377
        %v1392 = vpack.c.b16 %v1380, %v1379
        %v1393 = vpack.c.b16 %v1382, %v1381
        %v1394 = vpack.c.b16 %v1384, %v1383
        %v1395 = vpack.c.b16 %v1386, %v1385
        %v1396 = vpack.c.b16 %v1388, %v1387
        %1405 = vmatprep.subr.bf16.mxu0 0
        %1406 = vmatpush1.bf16.msra.mxu0 %v1389
        %1407 = vmatprep.subr.bf16.mxu0 0
        %1408 = vmatpush1.bf16.msra.mxu0 %v1390
        %1409 = vmatprep.subr.bf16.mxu0 0
        %1410 = vmatpush1.bf16.msra.mxu0 %v1391
        %1411 = vmatprep.subr.bf16.mxu0 0
        %1412 = vmatpush1.bf16.msra.mxu0 %v1392
        %1413 = vmatprep.subr.bf16.mxu0 0
        %1414 = vmatpush1.bf16.msra.mxu0 %v1393
        %1415 = vmatprep.subr.bf16.mxu0 0
        %1416 = vmatpush1.bf16.msra.mxu0 %v1394
        %1417 = vmatprep.subr.bf16.mxu0 0
        %1418 = vmatpush1.bf16.msra.mxu0 %v1395
        %1419 = vmatprep.subr.bf16.mxu0 0
        %1420 = vmatpush1.bf16.msra.mxu0 %v1396
        %1421 = vmatprep.subr.bf16.mxu0 0
        %1422 = vmatpush1.bf16.msra.mxu0 0
        %1423 = vmatprep.subr.bf16.mxu0 0
        %1424 = vmatpush1.bf16.msra.mxu0 0
        %1425 = vmatprep.subr.bf16.mxu0 0
        %1426 = vmatpush1.bf16.msra.mxu0 0
        %1427 = vmatprep.subr.bf16.mxu0 0
        %1428 = vmatpush1.bf16.msra.mxu0 0
        %1429 = vmatprep.subr.bf16.mxu0 0
        %1430 = vmatpush1.bf16.msra.mxu0 0
        %1431 = vmatprep.subr.bf16.mxu0 0
        %1432 = vmatpush1.bf16.msra.mxu0 0
        %1433 = vmatprep.subr.bf16.mxu0 0
        %1434 = vmatpush1.bf16.msra.mxu0 0
        %1435 = vmatprep.subr.bf16.mxu0 0
        %1436 = vmatpush1.bf16.msra.mxu0 0
        %1437 = vmatprep.mubr.bf16.mxu0 0
        %1438 = vmatmul.mubr.bf16.gmra.mrb[0].mxu0 %v1333
        %v1439 = vpop.f32.mrb[0].mxu0
        %v1440 = vadd.f32 %v1355, %v1439
        %v1441 = vpop.f32.mrb[0].mxu0
        %v1442 = vpop.f32.mrb[0].mxu0
        %v1443 = vadd.f32 %v1355, %v1442
        %v1444 = vpop.f32.mrb[0].mxu0
        %1445 = vdwg.mxu0
        %1446 = vst [vmem:[%s416] sm:$0xff] %v1440
        %1447 = vst [vmem:[%s416 + $0x8] sm:$0xff] %v1443
        %s1448 = sand.u32 %s230, 1
        %s1449 = scalar_lea.sflag [#allocation4], %s1448
        %s1450 = sand.u32 %s230, 1
        %s1451 = smul.addr %s1450, 16
        %s1452 = scalar_lea.vmem [#allocation11], %s1451
        // Predicated region
        $region77: #{tpu_custom_call.1} parent=55 // pred_check
          %p1453 = pneg %p240
        $region78: #{tpu_custom_call.1} parent=55 // pred_check_branch
          %1455 = sbr.rel (%p1453) target = $region80
        $region79: #{tpu_custom_call.1} parent=55 // pred_region
          %s1456 = smul.u32 2, %s28
          %s1457 = ssub.s32 3, %s1456
          %p1458 = scmp.lt.s32.totalorder %s1457, 2
          %s1459 = scalar_select %p1458, %s1457, 2
          %s1460 = smul.u32 128, %s1459
          %s1462 = ssub.s32 256, %s1460
          %1463 = vsyncadd %s1449, %s1462
          %p1464 = scmp.ne.s32.totalorder 0, %s1460
          %s1465 = smul.addr %s1456, 128
          %s1466 = scalar_lea.hbm %s9, %s1465
          %s1467 = smul.u32 8, %s1459
          %s1468 = sshll.u32 %s1452, 4
          %s1469 = int_to_ptr.vmem [resolvable:$true] %s1468
          %s1470 = sshll.u32 %s1467, 4
          %1474 = dma.vmem_to_hbm [thread:$0]  (%p1464), %s1469, %s1470, %s1466, %s1449, 128, 128, 8
        $region80: #{tpu_custom_call.1} parent=55 // pred_fallthru
          _
      $region56: #{tpu_custom_call.1} parent=5 // pred_fallthru
        _
      %p1475 = scmp.le.s32.totalorder 2, %s23
      // Predicated region
      $region81: #{tpu_custom_call.1} parent=5 // pred_check
        %p1476 = pneg %p1475
      $region82: #{tpu_custom_call.1} parent=5 // pred_check_branch
        %1478 = sbr.rel (%p1476) target = $region84
      $region83: #{tpu_custom_call.1} parent=5 // pred_region
        %s1479 = ssub.s32 %s23, 2
        // Predicated region
        $region85: #{tpu_custom_call.1} parent=83 // pred_check
          %p1480 = pneg %p246
        $region86: #{tpu_custom_call.1} parent=83 // pred_check_branch
          %1482 = sbr.rel (%p1480) target = $region88
        $region87: #{tpu_custom_call.1} parent=83 // pred_region
          %s1483 = sand.u32 %s231, 1
          %s1484 = scalar_lea.sflag [#allocation4], %s1483
          %s1485 = sand.u32 %s231, 1
          %s1486 = smul.addr %s1485, 16
          %s1487 = scalar_lea.vmem [#allocation11], %s1486
          %1488 = dma.done %s1484, 256
        $region88: #{tpu_custom_call.1} parent=83 // pred_fallthru
          _
      $region84: #{tpu_custom_call.1} parent=5 // pred_fallthru
        _
    $region6: #{tpu_custom_call.1} parent=1 // loop_footer
      %s27 = sadd.s32 1, %s23
    $region7: #{tpu_custom_call.1} parent=1 // loop_footer_branch
      %22 = sbr.rel target = $region3
    $region8: #{tpu_custom_call.1} parent=1 // loop_exit
      _
    %1489 = vsyncpa [#allocation3], 1
    %s1490 = scalar_lea.sflag [#allocation3], 1
    %1491 = vsyncpa %s1490, 1
    %1492 = vsyncpa [#allocation6], 1
    %1493 = vsyncpa [#allocation9], 1
    %1494 = vsyncpa [#allocation4], 1
    %s1495 = scalar_lea.sflag [#allocation4], 1
    %1496 = vsyncpa %s1495, 1

</llo_original>
